<compile_context>
chip_gen: v7x
topology: tpu7x:2x2x1
jax: 0.10.0
libtpu: 0.0.40
codegen_flags: <defaults>
</compile_context>

<pallas_src>
import functools

import jax
import jax.numpy as jnp
from jax.experimental import pallas as pl
from jax.experimental.pallas import tpu as pltpu


_LANE = 128           # TPU lane width; M tiles are multiples of this.
_MAX_TILE_COLS = 2048  # upper bound on the M tile (lanes) per grid step.


def _round_up(x, m):
    return (x + m - 1) // m * m


def _vmem_limit_bytes():
    """~60% of physical VMEM: ~38 MiB on v7x (64 MiB), ~76 MiB on v5e/v6e."""
    try:
        cap = int(pltpu.get_tpu_info().vmem_capacity_bytes)
    except Exception:
        cap = 64 * 1024 * 1024  # conservative (v7x-sized) fallback
    return max(32 * 1024 * 1024, min(int(cap * 0.6), 96 * 1024 * 1024))


def _pick_tile_cols(m, k9, cout, *, vmem_budget):
    """Pick the pixel-column (lane) tile for the conv kernel.

    VMEM-aware: double-buffered bf16 patches/y blocks plus the (auto double-
    buffered) resident weight block must fit the budget.  Also guarantees at
    least two grid steps when the problem allows it, so the "parallel" axis
    shards across v7x's two TensorCores and pipelining overlaps DMA/compute.
    """
    per_col = 2 * k9 * 2 + 2 * cout * 2          # bf16 patches + bf16 y, x2 buffers
    fixed = 2 * k9 * cout * 2 + (1 << 20)        # resident weights (x2) + slack
    cap = max(_LANE, (vmem_budget - fixed) // per_col)
    tile = min(_MAX_TILE_COLS, cap)
    tile = max(_LANE, tile // _LANE * _LANE)
    tile = min(tile, _round_up(m, _LANE))        # never pad a tiny problem up
    if m > _LANE and 2 * tile > _round_up(m, _LANE):
        # Split into (at least) two tiles for megacore sharding / pipelining.
        tile = min(tile, max(_LANE, _round_up(pl.cdiv(m, 2), _LANE)))
    m_pad = _round_up(m, tile)
    return tile, m_pad


# --------------------------- Pallas kernels ---------------------------------


def _conv_stats_kernel(p_ref, wt_ref, y_ref, stats_ref, *, m_true, tile_cols):
    """One channel-major conv tile: single MXU matmul + centered BN partials.

    p_ref     : [9*Cin, TM]  bf16 im2col patch columns (lane-dense)
    wt_ref    : [Cout, 9*Cin] bf16 conv weights (resident across the grid)
    y_ref     : [Cout, TM]   bf16 conv output (conv bias folded away)
    stats_ref : [1, Cout, 2] f32 per-tile partials: [:,:,0]=sum,
                [:,:,1]=sum((y - tile_mean)^2) over the tile's *valid* columns
    """
    i = pl.program_id(0)
    acc = jnp.dot(wt_ref[...], p_ref[...],
                  preferred_element_type=jnp.float32)          # [Cout, TM] f32
    y_ref[...] = acc.astype(y_ref.dtype)                       # bf16 intermediate

    # Padded patch columns are exact zeros -> they contribute 0 to the raw sum.
    s = jnp.sum(acc, axis=1, keepdims=True)                    # [Cout, 1]
    cnt = jnp.maximum(jnp.minimum(m_true - i * tile_cols, tile_cols), 1)
    mu = s / cnt.astype(jnp.float32)                           # per-tile mean
    col = i * tile_cols + jax.lax.broadcasted_iota(jnp.int32, acc.shape, 1)
    dif = jnp.where(col < m_true, acc - mu, 0.0)               # mask padded cols
    q = jnp.sum(dif * dif, axis=1, keepdims=True)              # centered SSQ
    stats_ref[...] = jnp.concatenate([s, q], axis=1)[None]     # [1, Cout, 2]


def _bn_relu_kernel(y_ref, sc_ref, sh_ref, o_ref):
    """Lane-dense fused BatchNorm(affine) + ReLU (final stage only).

    y_ref  : [Cout, TM] bf16 conv output
    sc_ref : [Cout, 1]  f32 per-channel scale (gamma * rsqrt(var + eps))
    sh_ref : [Cout, 1]  f32 per-channel shift (beta - mean * scale)
    o_ref  : [Cout, TM] output
    """
    y = y_ref[...].astype(jnp.float32)
    o_ref[...] = jnp.maximum(y * sc_ref[...] + sh_ref[...], 0.0).astype(o_ref.dtype)


# --------------------------- pallas_call wrappers ----------------------------


def _conv_channel_major(patches, wt, *, m_true, tile_cols, vmem_limit):
    """Tiled channel-major conv-as-matmul + per-tile BN partial statistics."""
    k9, m_pad = patches.shape
    cout = wt.shape[0]
    n_tiles = m_pad // tile_cols

    kern = functools.partial(_conv_stats_kernel, m_true=m_true,
                             tile_cols=tile_cols)
    flops = 2 * cout * k9 * m_pad
    bytes_accessed = (k9 * m_pad * 2 + cout * k9 * 2 + cout * m_pad * 2
                      + n_tiles * cout * 2 * 4)

    return pl.pallas_call(
        kern,
        out_shape=(
            jax.ShapeDtypeStruct((cout, m_pad), jnp.bfloat16),
            jax.ShapeDtypeStruct((n_tiles, cout, 2), jnp.float32),
        ),
        grid=(n_tiles,),
        in_specs=[
            pl.BlockSpec((k9, tile_cols), lambda i: (0, i)),
            pl.BlockSpec((cout, k9), lambda i: (0, 0)),        # resident weights
        ],
        out_specs=(
            pl.BlockSpec((cout, tile_cols), lambda i: (0, i)),  # lane-dense y
            pl.BlockSpec((1, cout, 2), lambda i: (i, 0, 0)),
        ),
        compiler_params=pltpu.CompilerParams(
            dimension_semantics=("parallel",),                  # shards on v7x 2 TCs
            vmem_limit_bytes=vmem_limit,
        ),
        cost_estimate=pl.CostEstimate(
            flops=flops, transcendentals=0, bytes_accessed=bytes_accessed),
    )(patches, wt)


def _bn_relu_channel_major(y, scale, shift, *, tile_cols, out_dtype, vmem_limit):
    """Tiled, lane-dense scale*y + shift -> ReLU (final stage only)."""
    cout, m_pad = y.shape
    n_tiles = m_pad // tile_cols
    out_bytes = cout * m_pad * jnp.dtype(out_dtype).itemsize

    return pl.pallas_call(
        _bn_relu_kernel,
        out_shape=jax.ShapeDtypeStruct((cout, m_pad), out_dtype),
        grid=(n_tiles,),
        in_specs=[
            pl.BlockSpec((cout, tile_cols), lambda i: (0, i)),
            pl.BlockSpec((cout, 1), lambda i: (0, 0)),
            pl.BlockSpec((cout, 1), lambda i: (0, 0)),
        ],
        out_specs=pl.BlockSpec((cout, tile_cols), lambda i: (0, i)),
        compiler_params=pltpu.CompilerParams(
            dimension_semantics=("parallel",),
            vmem_limit_bytes=vmem_limit,
        ),
        cost_estimate=pl.CostEstimate(
            flops=3 * cout * m_pad, transcendentals=0,
            bytes_accessed=cout * m_pad * 2 + out_bytes + 2 * cout * 4),
    )(y, scale, shift)


# --------------------------- one conv + BN-stats stage -----------------------


def _im2col_channel_major(x_cf, padding, dilation):
    """Channel-major im2col (built by fused XLA slices in the wrapper).

    x_cf: [C, N, H, W] -> patches [9*C, N*Ho*Wo] with K order (kh, kw, c) and
    M order (n, ho, wo).
    """
    c, n, h, w = x_cf.shape
    d = dilation
    ho = h + 2 * padding - 2 * d
    wo = w + 2 * padding - 2 * d
    assert ho > 0 and wo > 0, (ho, wo)
    xp = jnp.pad(x_cf, ((0, 0), (0, 0), (padding, padding), (padding, padding)))
    taps = [xp[:, :, kh * d:kh * d + ho, kw * d:kw * d + wo]
            for kh in range(3) for kw in range(3)]
    pat = jnp.stack(taps, axis=0).reshape(9 * c, n * ho * wo)
    return pat, ho, wo


def _finalize_bn(stats, m_true, tile_cols, gamma, beta, eps):
    """Combine per-tile (sum, centered SSQ, count) into global BN scale/shift."""
    s_t = stats[:, :, 0]                                       # [T, Cout]
    q_t = stats[:, :, 1]                                       # [T, Cout]
    n_tiles = stats.shape[0]
    c_t = jnp.clip(m_true - jnp.arange(n_tiles) * tile_cols,
                   0, tile_cols).astype(jnp.float32)[:, None]  # valid cols / tile
    mean = jnp.sum(s_t, axis=0) / m_true
    mu_t = s_t / jnp.maximum(c_t, 1.0)
    m2 = jnp.sum(q_t, axis=0) + jnp.sum(c_t * (mu_t - mean[None, :]) ** 2, axis=0)
    var = jnp.maximum(m2 / m_true, 0.0)                        # biased, like torch BN
    scale = gamma * jax.lax.rsqrt(var + eps)
    shift = beta - mean * scale
    return scale[:, None].astype(jnp.float32), shift[:, None].astype(jnp.float32)


def conv_stage(x_cf, w_oihw, gamma, beta, *, padding, dilation, eps, vmem_limit):
    """conv3x3 (bias folded away, see module header) + global BN scale/shift.

    x_cf: [Cin, N, H, W] (any float dtype), w_oihw: [Cout, Cin, 3, 3].
    Returns (y [Cout, m_pad] bf16 pre-BN conv output, scale, shift, geometry).
    """
    cin, n, h, w = x_cf.shape
    cout = w_oihw.shape[0]
    k9 = 9 * cin

    pat, ho, wo = _im2col_channel_major(x_cf.astype(jnp.bfloat16), padding, dilation)
    m = n * ho * wo
    tile_cols, m_pad = _pick_tile_cols(m, k9, cout,
                                       vmem_budget=int(vmem_limit * 0.75))
    pat = jnp.pad(pat, ((0, 0), (0, m_pad - m)))
    wt = jnp.transpose(w_oihw, (0, 2, 3, 1)).reshape(cout, k9).astype(jnp.bfloat16)

    y, stats = _conv_channel_major(pat, wt, m_true=m, tile_cols=tile_cols,
                                   vmem_limit=vmem_limit)
    scale, shift = _finalize_bn(stats, m, tile_cols, gamma, beta, eps)
    return y, scale, shift, (ho, wo, m, tile_cols)


# --------------------------- full REBNCONV forward ---------------------------


def rebnconv_forward(x_nchw, params, *, padding, dirate, eps=1e-5):
    """REBNCONV forward. Input/output are NCHW to match the PyTorch module.

    The conv biases `b1`/`b2` cancel exactly under train-mode BatchNorm (the
    batch mean absorbs them), so they are never materialized.
    """
    vmem_limit = _vmem_limit_bytes()
    n = x_nchw.shape[0]
    c1 = params["w1"].shape[0]
    c2 = params["w2"].shape[0]

    # NCHW -> channel-major [Cin, N, H, W] (boundary transpose only).
    x_cf = jnp.transpose(x_nchw, (1, 0, 2, 3))

    # ---- stage 1: conv + BN statistics (Pallas kernel A) ----
    y1, sc1, sh1, (h1, w1, m1, _) = conv_stage(
        x_cf, params["w1"], params["g1"], params["beta1"],
        padding=padding, dilation=dirate, eps=eps, vmem_limit=vmem_limit)

    # Stage-1 BN+ReLU is folded into stage-2's patch construction; XLA fuses
    # this elementwise into the im2col slices, so there is no separate
    # read+write pass over the intermediate activation.
    a1 = jnp.maximum(y1[:, :m1].astype(jnp.float32) * sc1 + sh1, 0.0)
    a1 = a1.reshape(c1, n, h1, w1).astype(jnp.bfloat16)

    # ---- stage 2: conv + BN statistics, then lane-dense BN+ReLU kernel B ----
    y2, sc2, sh2, (h2, w2, m2, tile2) = conv_stage(
        a1, params["w2"], params["g2"], params["beta2"],
        padding=padding, dilation=dirate, eps=eps, vmem_limit=vmem_limit)
    out = _bn_relu_channel_major(y2, sc2, sh2, tile_cols=tile2,
                                 out_dtype=jnp.float32, vmem_limit=vmem_limit)

    out = out[:, :m2].reshape(c2, n, h2, w2)
    return jnp.transpose(out, (1, 0, 2, 3))                    # -> NCHW


# --------------------------- params & reference ------------------------------


def init_rebnconv_params(key, in_ch, out_ch):
    """Deterministic init matching the PyTorch module's parameter shapes."""
    k1, k2, k3, k4 = jax.random.split(key, 4)
    bound1 = 1.0 / (in_ch * 9.0) ** 0.5
    bound2 = 1.0 / (out_ch * 9.0) ** 0.5
    return {
        # conv weights in PyTorch OIHW layout: [Cout, Cin, 3, 3]
        "w1": jax.random.uniform(k1, (out_ch, in_ch, 3, 3), jnp.float32,
                                 -bound1, bound1),
        "b1": jax.random.uniform(k2, (out_ch,), jnp.float32, -bound1, bound1),
        "g1": jnp.ones((out_ch,), jnp.float32),       # BN gamma init = 1
        "beta1": jnp.zeros((out_ch,), jnp.float32),   # BN beta init = 0
        "w2": jax.random.uniform(k3, (out_ch, out_ch, 3, 3), jnp.float32,
                                 -bound2, bound2),
        "b2": jax.random.uniform(k4, (out_ch,), jnp.float32, -bound2, bound2),
        "g2": jnp.ones((out_ch,), jnp.float32),
        "beta2": jnp.zeros((out_ch,), jnp.float32),
    }


def _reference_stage(x_nchw, w, b, gamma, beta, *, padding, dilation, eps=1e-5):
    """Pure-JAX f32 reference for one stage (correctness check only)."""
    y = jax.lax.conv_general_dilated(
        x_nchw, w, window_strides=(1, 1),
        padding=[(padding, padding), (padding, padding)],
        rhs_dilation=(dilation, dilation),
        dimension_numbers=("NCHW", "OIHW", "NCHW"),
    ) + b[None, :, None, None]
    mean = jnp.mean(y, axis=(0, 2, 3), keepdims=True)
    var = jnp.mean((y - mean) ** 2, axis=(0, 2, 3), keepdims=True)
    y = ((y - mean) * jax.lax.rsqrt(var + eps) * gamma[None, :, None, None]
         + beta[None, :, None, None])
    return jnp.maximum(y, 0.0)


def _reference_forward(x_nchw, params, *, padding, dirate):
    x = _reference_stage(x_nchw, params["w1"], params["b1"], params["g1"],
                         params["beta1"], padding=padding, dilation=dirate)
    x = _reference_stage(x, params["w2"], params["b2"], params["g2"],
                         params["beta2"], padding=padding, dilation=dirate)
    return x


if __name__ == "__main__":
    # Small shapes consistent with the module: batch=2, in_ch=4, out_ch=8, 16x16.
    N, IN_CH, OUT_CH, H, W = 2, 4, 8, 16, 16
    PADDING, DIRATE = 1, 1

    key = jax.random.PRNGKey(0)
    kx, kp = jax.random.split(key)
    x = jax.random.normal(kx, (N, IN_CH, H, W), jnp.float32)   # NCHW like PyTorch
    params = init_rebnconv_params(kp, IN_CH, OUT_CH)

    fwd = jax.jit(functools.partial(rebnconv_forward, padding=PADDING,
                                    dirate=DIRATE))
    out = jax.block_until_ready(fwd(x, params))
    assert out.shape == (N, OUT_CH, H, W), out.shape

    # Sanity check against a pure-JAX f32 reference (the kernel runs the conv
    # in bf16 on the MXU and carries a bf16 intermediate, hence the tolerance).
    ref = jax.block_until_ready(
        _reference_forward(x, params, padding=PADDING, dirate=DIRATE))
    max_err = float(jnp.max(jnp.abs(out - ref)))
    assert jnp.allclose(out, ref, rtol=5e-2, atol=5e-2), max_err

    print("KERNEL_OK")
</pallas_src>

<mosaic_0001>
module attributes {stable_mosaic.version = 11 : i64} {
  func.func @_conv_stats_kernel(%arg0: i32, %arg1: memref<36x256xbf16, #tpu.memory_space<vmem>>, %arg2: memref<8x36xbf16, #tpu.memory_space<vmem>>, %arg3: memref<8x256xbf16, #tpu.memory_space<vmem>>, %arg4: memref<1x8x2xf32, #tpu.memory_space<vmem>>) attributes {dimension_semantics = [#tpu.dimension_semantics<parallel>], iteration_bounds = array<i64: 2>, scalar_prefetch = 0 : i64, scratch_operands = 0 : i64, tpu.core_type = #tpu.core_type<tc>, window_params = [{transform_indices = @transform_0, window_bounds = array<i64: 36, 256>}, {pipeline_mode = #tpu.pipeline_mode<synchronous>, transform_indices = @transform_1, window_bounds = array<i64: 8, 36>}, {transform_indices = @transform_2, window_bounds = array<i64: 8, 256>}, {transform_indices = @transform_3, window_bounds = array<i64: 1, 8, 2>}]} {
    %c0 = arith.constant 0 : index
    %c0_0 = arith.constant 0 : index
    %0 = vector.load %arg2[%c0, %c0_0] : memref<8x36xbf16, #tpu.memory_space<vmem>>, vector<8x36xbf16>
    %c0_1 = arith.constant 0 : index
    %c0_2 = arith.constant 0 : index
    %1 = vector.load %arg1[%c0_1, %c0_2] : memref<36x256xbf16, #tpu.memory_space<vmem>>, vector<36x256xbf16>
    %cst = arith.constant dense<0.000000e+00> : vector<8x256xf32>
    %2 = tpu.matmul %0, %1, %cst {dimension_numbers = #tpu.dot_dimension_numbers<[1], [0], [0], [1], [0, 0, 1, 1], [], []>} : vector<8x36xbf16>, vector<36x256xbf16>, vector<8x256xf32> -> vector<8x256xf32>
    %3 = arith.truncf %2 : vector<8x256xf32> to vector<8x256xbf16>
    %c0_3 = arith.constant 0 : index
    %c0_4 = arith.constant 0 : index
    %4 = vector.load %arg3[%c0_3, %c0_4] : memref<8x256xbf16, #tpu.memory_space<vmem>>, vector<8x256xbf16>
    tpu.vector_store %arg3[%c0_3, %c0_4], %3 {strides = array<i32>} : memref<8x256xbf16, #tpu.memory_space<vmem>>, vector<8x256xbf16>,
    %cst_5 = arith.constant dense<0.000000e+00> : vector<8xf32>
    %5 = vector.multi_reduction <add>, %2, %cst_5 [1] : vector<8x256xf32> to vector<8xf32>
    %6 = vector.shape_cast %5 : vector<8xf32> to vector<8x1xf32>
    %c256_i32 = arith.constant 256 : i32
    %7 = arith.muli %arg0, %c256_i32 : i32
    %c512_i32 = arith.constant 512 : i32
    %8 = arith.subi %c512_i32, %7 : i32
    %c256_i32_6 = arith.constant 256 : i32
    %9 = arith.minsi %8, %c256_i32_6 : i32
    %c1_i32 = arith.constant 1 : i32
    %10 = arith.maxsi %9, %c1_i32 : i32
    %11 = arith.sitofp %10 : i32 to f32
    %12 = vector.broadcast %11 : f32 to vector<8x1xf32>
    %13 = arith.divf %6, %12 : vector<8x1xf32>
    %c256_i32_7 = arith.constant 256 : i32
    %14 = arith.muli %arg0, %c256_i32_7 : i32
    %15 = tpu.iota {dimensions = array<i32: 1>} : vector<8x256xi32>
    %16 = vector.broadcast %14 : i32 to vector<8x256xi32>
    %17 = arith.addi %16, %15 : vector<8x256xi32>
    %c512_i32_8 = arith.constant 512 : i32
    %18 = vector.broadcast %c512_i32_8 : i32 to vector<8x256xi32>
    %19 = arith.cmpi slt, %17, %18 : vector<8x256xi32>
    %20 = vector.broadcast %13 : vector<8x1xf32> to vector<8x256xf32>
    %21 = arith.subf %2, %20 : vector<8x256xf32>
    %cst_9 = arith.constant 0.000000e+00 : f32
    %22 = vector.broadcast %cst_9 : f32 to vector<8x256xf32>
    %23 = arith.select %19, %21, %22 : vector<8x256xi1>, vector<8x256xf32>
    %24 = arith.mulf %23, %23 : vector<8x256xf32>
    %cst_10 = arith.constant dense<0.000000e+00> : vector<8xf32>
    %25 = vector.multi_reduction <add>, %24, %cst_10 [1] : vector<8x256xf32> to vector<8xf32>
    %26 = vector.shape_cast %25 : vector<8xf32> to vector<8x1xf32>
    %27 = tpu.concatenate %6, %26 in 1 : vector<8x1xf32>, vector<8x1xf32> -> vector<8x2xf32>
    %28 = vector.shape_cast %27 : vector<8x2xf32> to vector<1x8x2xf32>
    %c0_11 = arith.constant 0 : index
    %c0_12 = arith.constant 0 : index
    %c0_13 = arith.constant 0 : index
    %29 = vector.load %arg4[%c0_11, %c0_12, %c0_13] : memref<1x8x2xf32, #tpu.memory_space<vmem>>, vector<1x8x2xf32>
    tpu.vector_store %arg4[%c0_11, %c0_12, %c0_13], %28 {strides = array<i32>} : memref<1x8x2xf32, #tpu.memory_space<vmem>>, vector<1x8x2xf32>,
    return
  }
  func.func @transform_0(%arg0: i32) -> (i32, i32) {
    %c0_i32 = arith.constant 0 : i32
    %c0_i32_0 = arith.constant 0 : i32
    return %c0_i32, %arg0 : i32, i32
  }
  func.func @transform_1(%arg0: i32) -> (i32, i32) {
    %c0_i32 = arith.constant 0 : i32
    %c0_i32_0 = arith.constant 0 : i32
    %c0_i32_1 = arith.constant 0 : i32
    return %c0_i32, %c0_i32_0 : i32, i32
  }
  func.func @transform_2(%arg0: i32) -> (i32, i32) {
    %c0_i32 = arith.constant 0 : i32
    %c0_i32_0 = arith.constant 0 : i32
    return %c0_i32, %arg0 : i32, i32
  }
  func.func @transform_3(%arg0: i32) -> (i32, i32, i32) {
    %c0_i32 = arith.constant 0 : i32
    %c0_i32_0 = arith.constant 0 : i32
    %c0_i32_1 = arith.constant 0 : i32
    return %arg0, %c0_i32, %c0_i32_0 : i32, i32, i32
  }
}

module attributes {stable_mosaic.version = 11 : i64} {
  func.func @_conv_stats_kernel(%arg0: i32, %arg1: memref<72x256xbf16, #tpu.memory_space<vmem>>, %arg2: memref<8x72xbf16, #tpu.memory_space<vmem>>, %arg3: memref<8x256xbf16, #tpu.memory_space<vmem>>, %arg4: memref<1x8x2xf32, #tpu.memory_space<vmem>>) attributes {dimension_semantics = [#tpu.dimension_semantics<parallel>], iteration_bounds = array<i64: 2>, scalar_prefetch = 0 : i64, scratch_operands = 0 : i64, tpu.core_type = #tpu.core_type<tc>, window_params = [{transform_indices = @transform_0, window_bounds = array<i64: 72, 256>}, {pipeline_mode = #tpu.pipeline_mode<synchronous>, transform_indices = @transform_1, window_bounds = array<i64: 8, 72>}, {transform_indices = @transform_2, window_bounds = array<i64: 8, 256>}, {transform_indices = @transform_3, window_bounds = array<i64: 1, 8, 2>}]} {
    %c0 = arith.constant 0 : index
    %c0_0 = arith.constant 0 : index
    %0 = vector.load %arg2[%c0, %c0_0] : memref<8x72xbf16, #tpu.memory_space<vmem>>, vector<8x72xbf16>
    %c0_1 = arith.constant 0 : index
    %c0_2 = arith.constant 0 : index
    %1 = vector.load %arg1[%c0_1, %c0_2] : memref<72x256xbf16, #tpu.memory_space<vmem>>, vector<72x256xbf16>
    %cst = arith.constant dense<0.000000e+00> : vector<8x256xf32>
    %2 = tpu.matmul %0, %1, %cst {dimension_numbers = #tpu.dot_dimension_numbers<[1], [0], [0], [1], [0, 0, 1, 1], [], []>} : vector<8x72xbf16>, vector<72x256xbf16>, vector<8x256xf32> -> vector<8x256xf32>
    %3 = arith.truncf %2 : vector<8x256xf32> to vector<8x256xbf16>
    %c0_3 = arith.constant 0 : index
    %c0_4 = arith.constant 0 : index
    %4 = vector.load %arg3[%c0_3, %c0_4] : memref<8x256xbf16, #tpu.memory_space<vmem>>, vector<8x256xbf16>
    tpu.vector_store %arg3[%c0_3, %c0_4], %3 {strides = array<i32>} : memref<8x256xbf16, #tpu.memory_space<vmem>>, vector<8x256xbf16>,
    %cst_5 = arith.constant dense<0.000000e+00> : vector<8xf32>
    %5 = vector.multi_reduction <add>, %2, %cst_5 [1] : vector<8x256xf32> to vector<8xf32>
    %6 = vector.shape_cast %5 : vector<8xf32> to vector<8x1xf32>
    %c256_i32 = arith.constant 256 : i32
    %7 = arith.muli %arg0, %c256_i32 : i32
    %c512_i32 = arith.constant 512 : i32
    %8 = arith.subi %c512_i32, %7 : i32
    %c256_i32_6 = arith.constant 256 : i32
    %9 = arith.minsi %8, %c256_i32_6 : i32
    %c1_i32 = arith.constant 1 : i32
    %10 = arith.maxsi %9, %c1_i32 : i32
    %11 = arith.sitofp %10 : i32 to f32
    %12 = vector.broadcast %11 : f32 to vector<8x1xf32>
    %13 = arith.divf %6, %12 : vector<8x1xf32>
    %c256_i32_7 = arith.constant 256 : i32
    %14 = arith.muli %arg0, %c256_i32_7 : i32
    %15 = tpu.iota {dimensions = array<i32: 1>} : vector<8x256xi32>
    %16 = vector.broadcast %14 : i32 to vector<8x256xi32>
    %17 = arith.addi %16, %15 : vector<8x256xi32>
    %c512_i32_8 = arith.constant 512 : i32
    %18 = vector.broadcast %c512_i32_8 : i32 to vector<8x256xi32>
    %19 = arith.cmpi slt, %17, %18 : vector<8x256xi32>
    %20 = vector.broadcast %13 : vector<8x1xf32> to vector<8x256xf32>
    %21 = arith.subf %2, %20 : vector<8x256xf32>
    %cst_9 = arith.constant 0.000000e+00 : f32
    %22 = vector.broadcast %cst_9 : f32 to vector<8x256xf32>
    %23 = arith.select %19, %21, %22 : vector<8x256xi1>, vector<8x256xf32>
    %24 = arith.mulf %23, %23 : vector<8x256xf32>
    %cst_10 = arith.constant dense<0.000000e+00> : vector<8xf32>
    %25 = vector.multi_reduction <add>, %24, %cst_10 [1] : vector<8x256xf32> to vector<8xf32>
    %26 = vector.shape_cast %25 : vector<8xf32> to vector<8x1xf32>
    %27 = tpu.concatenate %6, %26 in 1 : vector<8x1xf32>, vector<8x1xf32> -> vector<8x2xf32>
    %28 = vector.shape_cast %27 : vector<8x2xf32> to vector<1x8x2xf32>
    %c0_11 = arith.constant 0 : index
    %c0_12 = arith.constant 0 : index
    %c0_13 = arith.constant 0 : index
    %29 = vector.load %arg4[%c0_11, %c0_12, %c0_13] : memref<1x8x2xf32, #tpu.memory_space<vmem>>, vector<1x8x2xf32>
    tpu.vector_store %arg4[%c0_11, %c0_12, %c0_13], %28 {strides = array<i32>} : memref<1x8x2xf32, #tpu.memory_space<vmem>>, vector<1x8x2xf32>,
    return
  }
  func.func @transform_0(%arg0: i32) -> (i32, i32) {
    %c0_i32 = arith.constant 0 : i32
    %c0_i32_0 = arith.constant 0 : i32
    return %c0_i32, %arg0 : i32, i32
  }
  func.func @transform_1(%arg0: i32) -> (i32, i32) {
    %c0_i32 = arith.constant 0 : i32
    %c0_i32_0 = arith.constant 0 : i32
    %c0_i32_1 = arith.constant 0 : i32
    return %c0_i32, %c0_i32_0 : i32, i32
  }
  func.func @transform_2(%arg0: i32) -> (i32, i32) {
    %c0_i32 = arith.constant 0 : i32
    %c0_i32_0 = arith.constant 0 : i32
    return %c0_i32, %arg0 : i32, i32
  }
  func.func @transform_3(%arg0: i32) -> (i32, i32, i32) {
    %c0_i32 = arith.constant 0 : i32
    %c0_i32_0 = arith.constant 0 : i32
    %c0_i32_1 = arith.constant 0 : i32
    return %arg0, %c0_i32, %c0_i32_0 : i32, i32, i32
  }
}

module attributes {stable_mosaic.version = 11 : i64} {
  func.func @_bn_relu_kernel(%arg0: i32, %arg1: memref<8x256xbf16, #tpu.memory_space<vmem>>, %arg2: memref<8x1xf32, #tpu.memory_space<vmem>>, %arg3: memref<8x1xf32, #tpu.memory_space<vmem>>, %arg4: memref<8x256xf32, #tpu.memory_space<vmem>>) attributes {dimension_semantics = [#tpu.dimension_semantics<parallel>], iteration_bounds = array<i64: 2>, scalar_prefetch = 0 : i64, scratch_operands = 0 : i64, tpu.core_type = #tpu.core_type<tc>, window_params = [{transform_indices = @transform_0, window_bounds = array<i64: 8, 256>}, {pipeline_mode = #tpu.pipeline_mode<synchronous>, transform_indices = @transform_1, window_bounds = array<i64: 8, 1>}, {pipeline_mode = #tpu.pipeline_mode<synchronous>, transform_indices = @transform_2, window_bounds = array<i64: 8, 1>}, {transform_indices = @transform_3, window_bounds = array<i64: 8, 256>}]} {
    %c0 = arith.constant 0 : index
    %c0_0 = arith.constant 0 : index
    %0 = vector.load %arg1[%c0, %c0_0] : memref<8x256xbf16, #tpu.memory_space<vmem>>, vector<8x256xbf16>
    %1 = arith.extf %0 : vector<8x256xbf16> to vector<8x256xf32>
    %c0_1 = arith.constant 0 : index
    %c0_2 = arith.constant 0 : index
    %2 = vector.load %arg2[%c0_1, %c0_2] : memref<8x1xf32, #tpu.memory_space<vmem>>, vector<8x1xf32>
    %3 = vector.broadcast %2 : vector<8x1xf32> to vector<8x256xf32>
    %4 = arith.mulf %1, %3 : vector<8x256xf32>
    %c0_3 = arith.constant 0 : index
    %c0_4 = arith.constant 0 : index
    %5 = vector.load %arg3[%c0_3, %c0_4] : memref<8x1xf32, #tpu.memory_space<vmem>>, vector<8x1xf32>
    %6 = vector.broadcast %5 : vector<8x1xf32> to vector<8x256xf32>
    %7 = arith.addf %4, %6 : vector<8x256xf32>
    %cst = arith.constant 0.000000e+00 : f32
    %8 = vector.broadcast %cst : f32 to vector<8x256xf32>
    %9 = arith.maximumf %7, %8 : vector<8x256xf32>
    %c0_5 = arith.constant 0 : index
    %c0_6 = arith.constant 0 : index
    %10 = vector.load %arg4[%c0_5, %c0_6] : memref<8x256xf32, #tpu.memory_space<vmem>>, vector<8x256xf32>
    tpu.vector_store %arg4[%c0_5, %c0_6], %9 {strides = array<i32>} : memref<8x256xf32, #tpu.memory_space<vmem>>, vector<8x256xf32>,
    return
  }
  func.func @transform_0(%arg0: i32) -> (i32, i32) {
    %c0_i32 = arith.constant 0 : i32
    %c0_i32_0 = arith.constant 0 : i32
    return %c0_i32, %arg0 : i32, i32
  }
  func.func @transform_1(%arg0: i32) -> (i32, i32) {
    %c0_i32 = arith.constant 0 : i32
    %c0_i32_0 = arith.constant 0 : i32
    %c0_i32_1 = arith.constant 0 : i32
    return %c0_i32, %c0_i32_0 : i32, i32
  }
  func.func @transform_2(%arg0: i32) -> (i32, i32) {
    %c0_i32 = arith.constant 0 : i32
    %c0_i32_0 = arith.constant 0 : i32
    %c0_i32_1 = arith.constant 0 : i32
    return %c0_i32, %c0_i32_0 : i32, i32
  }
  func.func @transform_3(%arg0: i32) -> (i32, i32) {
    %c0_i32 = arith.constant 0 : i32
    %c0_i32_0 = arith.constant 0 : i32
    return %c0_i32, %arg0 : i32, i32
  }
}

</mosaic_0001>

<llo_original>
// kernel: rebnconv_forward.3
$region0: #{rebnconv_forward.3}
  #allocation0 [shape = 'u32[]', space=smem, size = 0x4, offset = 0x4, fixed_abs, tag = 'smem constant byte address 0x4 - core index']
  #allocation1 [shape = 'u32[144,128]{1,0:T(1,128)}', space=vmem, size = 0x12000, scoped, tag = 'internal scratch']
  %s0 = inlined_call_operand.vmem [shape: bf16[36,512], index: 0, kind: input, shape index: {}]
  %s1 = inlined_call_operand.vmem [shape: bf16[8,36], index: 1, kind: input, shape index: {}]
  %s2 = inlined_call_operand.vmem [shape: bf16[8,512], index: 2, kind: output, shape index: {0}]
  %s3 = inlined_call_operand.vmem [shape: f32[2,8,2], index: 3, kind: output, shape index: {1}]
  %4 = xla_tuple %s2, %s3
  %s5 = sld [smem:[#allocation0]]
  $region87: #{rebnconv_forward.3} parent=0
    _
  %s7 = ssub.s32 1, %s5
  %s8 = scalar_select 0, %s7, %s5
  $region1: #{rebnconv_forward.3} parent=0
    #allocation2 [shape = 'u8[40960]{0}', space=vmem, size = 0xa000, scoped, tag = 'input window, operand 0']
    loop: start=0, step=1, limit=4
    $region2: #{rebnconv_forward.3} parent=1 // loop_pre_header
      _
    $region3: #{rebnconv_forward.3} parent=1 // loop_header
      %s10 = sphi 0, %s14
      %p11 = scmp.ge.s32.totalorder %s10, 4
      %s20 = sphi 0, %s22
      %s23 = sphi 0, %s20
      %s24 = sphi 0, %s23
      %s40 = sphi 0, %s24
      %s44 = sphi 0, %s44
      %s46 = sphi 0, %s44
      %s47 = sphi 0, %s46
      %s61 = sphi 0, %s47
      %s67 = sphi 0, %s69
      %s70 = sphi 0, %s67
      %s71 = sphi 0, %s70
      %s87 = sphi 0, %s71
      %s93 = sphi 0, %s95
      %s96 = sphi 0, %s93
      %s97 = sphi 0, %s96
      %s113 = sphi 0, %s97
    $region4: #{rebnconv_forward.3} parent=1 // loop_header_branch
      %13 = sbr.rel (%p11) target = $region8
    $region5: #{rebnconv_forward.3} parent=1 // loop_body
      %s15 = ssub.s32 %s10, 1
      %s16 = ssub.s32 %s10, 2
      %s17 = sadd.s32 %s10, 1
      %s18 = ssub.s32 %s10, %s17
      %p19 = scmp.eq.s32.totalorder %s18, 0
      %s21 = sadd.s32 %s20, 1
      %s22 = scalar_select %p19, %s20, %s21
      %p25 = pneg %p19
      %p26 = scmp.eq.s32.totalorder %s10, 1
      %p27 = por %p25, %p26
      %p28 = scmp.ne.s32.totalorder %s20, %s23
      %p29 = scmp.eq.s32.totalorder %s10, 0
      %p30 = por %p28, %p29
      %p31 = scmp.ne.s32.totalorder %s20, %s23
      %p32 = scmp.eq.s32.totalorder %s15, 1
      %p33 = por %p31, %p32
      %p34 = scmp.ne.s32.totalorder %s23, %s24
      %p35 = scmp.eq.s32.totalorder %s15, 0
      %p36 = por %p34, %p35
      %p37 = scmp.ne.s32.totalorder %s23, %s24
      %p38 = scmp.eq.s32.totalorder %s16, 1
      %p39 = por %p37, %p38
      %p41 = scmp.ne.s32.totalorder %s24, %s40
      %p42 = scmp.eq.s32.totalorder %s16, 0
      %p43 = por %p41, %p42
      %s45 = sadd.s32 %s44, 1
      %p48 = scmp.eq.s32.totalorder %s10, 1
      %p49 = scmp.ne.s32.totalorder %s44, %s46
      %p50 = scmp.eq.s32.totalorder %s10, 0
      %p51 = por %p49, %p50
      %p52 = scmp.ne.s32.totalorder %s44, %s46
      %p53 = scmp.eq.s32.totalorder %s15, 1
      %p54 = por %p52, %p53
      %p55 = scmp.ne.s32.totalorder %s46, %s47
      %p56 = scmp.eq.s32.totalorder %s15, 0
      %p57 = por %p55, %p56
      %p58 = scmp.ne.s32.totalorder %s46, %s47
      %p59 = scmp.eq.s32.totalorder %s16, 1
      %p60 = por %p58, %p59
      %p62 = scmp.ne.s32.totalorder %s47, %s61
      %p63 = scmp.eq.s32.totalorder %s16, 0
      %p64 = por %p62, %p63
      %s65 = ssub.s32 %s10, %s17
      %p66 = scmp.eq.s32.totalorder %s65, 0
      %s68 = sadd.s32 %s67, 1
      %s69 = scalar_select %p66, %s67, %s68
      %p72 = pneg %p66
      %p73 = scmp.eq.s32.totalorder %s10, 1
      %p74 = por %p72, %p73
      %p75 = scmp.ne.s32.totalorder %s67, %s70
      %p76 = scmp.eq.s32.totalorder %s10, 0
      %p77 = por %p75, %p76
      %p78 = scmp.ne.s32.totalorder %s67, %s70
      %p79 = scmp.eq.s32.totalorder %s15, 1
      %p80 = por %p78, %p79
      %p81 = scmp.ne.s32.totalorder %s70, %s71
      %p82 = scmp.eq.s32.totalorder %s15, 0
      %p83 = por %p81, %p82
      %p84 = scmp.ne.s32.totalorder %s70, %s71
      %p85 = scmp.eq.s32.totalorder %s16, 1
      %p86 = por %p84, %p85
      %p88 = scmp.ne.s32.totalorder %s71, %s87
      %p89 = scmp.eq.s32.totalorder %s16, 0
      %p90 = por %p88, %p89
      %s91 = ssub.s32 %s10, %s17
      %p92 = scmp.eq.s32.totalorder %s91, 0
      %s94 = sadd.s32 %s93, 1
      %s95 = scalar_select %p92, %s93, %s94
      %p98 = pneg %p92
      %p99 = scmp.eq.s32.totalorder %s10, 1
      %p100 = por %p98, %p99
      %p101 = scmp.ne.s32.totalorder %s93, %s96
      %p102 = scmp.eq.s32.totalorder %s10, 0
      %p103 = por %p101, %p102
      %p104 = scmp.ne.s32.totalorder %s93, %s96
      %p105 = scmp.eq.s32.totalorder %s15, 1
      %p106 = por %p104, %p105
      %p107 = scmp.ne.s32.totalorder %s96, %s97
      %p108 = scmp.eq.s32.totalorder %s15, 0
      %p109 = por %p107, %p108
      %p110 = scmp.ne.s32.totalorder %s96, %s97
      %p111 = scmp.eq.s32.totalorder %s16, 1
      %p112 = por %p110, %p111
      %p114 = scmp.ne.s32.totalorder %s97, %s113
      %p115 = scmp.eq.s32.totalorder %s16, 0
      %p116 = por %p114, %p115
      %p117 = scmp.le.s32.totalorder 1, %s10
      %p118 = scmp.lt.s32.totalorder %s10, 3
      %p119 = pnand %p117, %p118
      %p120 = pneg %p119
      // Predicated region
      $region9: #{rebnconv_forward.3} parent=5 // pred_check
        _
      $region10: #{rebnconv_forward.3} parent=5 // pred_check_branch
        %122 = sbr.rel (%p119) target = $region12
      $region11: #{rebnconv_forward.3} parent=5 // pred_region
        %s123 = ssub.s32 %s10, 1
        // Predicated region
        $region13: #{rebnconv_forward.3} parent=11 // pred_check
          %p124 = pneg %p57
        $region14: #{rebnconv_forward.3} parent=11 // pred_check_branch
          %126 = sbr.rel (%p124) target = $region16
        $region15: #{rebnconv_forward.3} parent=11 // pred_region
          _
        $region16: #{rebnconv_forward.3} parent=11 // pred_fallthru
          _
      $region12: #{rebnconv_forward.3} parent=5 // pred_fallthru
        _
      %p127 = scmp.lt.s32.totalorder %s10, 2
      // Predicated region
      $region17: #{rebnconv_forward.3} parent=5 // pred_check
        %p128 = pneg %p127
      $region18: #{rebnconv_forward.3} parent=5 // pred_check_branch
        %130 = sbr.rel (%p128) target = $region20
      $region19: #{rebnconv_forward.3} parent=5 // pred_region
        // Predicated region
        $region21: #{rebnconv_forward.3} parent=19 // pred_check
          %p131 = pneg %p30
        $region22: #{rebnconv_forward.3} parent=19 // pred_check_branch
          %133 = sbr.rel (%p131) target = $region24
        $region23: #{rebnconv_forward.3} parent=19 // pred_region
          %s134 = sand.u32 %s20, 1
          %s135 = sand.u32 %s20, 1
          %s136 = smul.addr %s135, 40
          %s137 = scalar_lea.vmem [#allocation2], %s136
          %s138 = smul.u32 2, %s10
          %s139 = smul.addr %s138, 4
          %s140 = scalar_lea.vmem %s0, %s139
          // Predicated region
          $region25: #{rebnconv_forward.3} parent=23 // pred_check
            _
          $region26: #{rebnconv_forward.3} parent=23 // pred_check_branch
            %142 = sbr.rel (0) target = $region28
          $region27: #{rebnconv_forward.3} parent=23 // pred_region
            // Predicated region
            $region29: #{rebnconv_forward.3} parent=27 // pred_check
              _
            $region30: #{rebnconv_forward.3} parent=27 // pred_check_branch
              %144 = sbr.rel (0) target = $region32
            $region31: #{rebnconv_forward.3} parent=27 // pred_region
              // Predicated region
              $region44: #{rebnconv_forward.3} parent=31 // pred_check
                _
              $region45: #{rebnconv_forward.3} parent=31 // pred_check_branch
                %167 = sbr.rel (0) target = $region47
              $region46: #{rebnconv_forward.3} parent=31 // pred_region
                loop: start=0, step=1, limit=1
                $region48: #{rebnconv_forward.3} parent=46 // loop_pre_header
                  _
                $region49: #{rebnconv_forward.3} parent=46 // loop_header
                  %s169 = sphi 0, %s173
                  %p170 = scmp.ge.s32.totalorder %s169, 1
                  %s174 = sphi %s140, %s140
                  %s175 = sphi %s137, %s137
                $region50: #{rebnconv_forward.3} parent=46 // loop_header_branch
                  %172 = sbr.rel (%p170) target = $region54
                $region51: #{rebnconv_forward.3} parent=46 // loop_body
                  %v176 = vld [vmem:[%s174] sm:$0xff]
                  %177 = vst [vmem:[%s175] sm:$0xff] %v176
                  %v178 = vld [vmem:[%s174 + $0x10] sm:$0xff]
                  %179 = vst [vmem:[%s175 + $0x8] sm:$0xff] %v178
                  %v180 = vld [vmem:[%s174 + $0x20] sm:$0xff]
                  %181 = vst [vmem:[%s175 + $0x10] sm:$0xff] %v180
                  %v182 = vld [vmem:[%s174 + $0x30] sm:$0xff]
                  %183 = vst [vmem:[%s175 + $0x18] sm:$0xff] %v182
                  %v184 = vld [vmem:[%s174 + $0x40] sm:$0xff]
                  %185 = vst [vmem:[%s175 + $0x20] sm:$0xff] %v184
                $region52: #{rebnconv_forward.3} parent=46 // loop_footer
                  %s173 = sadd.s32 1, %s169
                $region53: #{rebnconv_forward.3} parent=46 // loop_footer_branch
                  %168 = sbr.rel target = $region49
                $region54: #{rebnconv_forward.3} parent=46 // loop_exit
                  _
              $region47: #{rebnconv_forward.3} parent=31 // pred_fallthru
                _
              // Predicated region
              $region55: #{rebnconv_forward.3} parent=31 // pred_check
                _
              $region56: #{rebnconv_forward.3} parent=31 // pred_check_branch
                %187 = sbr.rel target = $region58
              $region57: #{rebnconv_forward.3} parent=31 // pred_region
                _
              $region58: #{rebnconv_forward.3} parent=31 // pred_fallthru
                _
            $region32: #{rebnconv_forward.3} parent=27 // pred_fallthru
              _
            // Predicated region
            $region33: #{rebnconv_forward.3} parent=27 // pred_check
              _
            $region34: #{rebnconv_forward.3} parent=27 // pred_check_branch
              %146 = sbr.rel target = $region36
            $region35: #{rebnconv_forward.3} parent=27 // pred_region
              loop: start=0, step=1, limit=1
              $region37: #{rebnconv_forward.3} parent=35 // loop_pre_header
                _
              $region38: #{rebnconv_forward.3} parent=35 // loop_header
                %s149 = sphi 0, %s153
                %p150 = scmp.ge.s32.totalorder %s149, 1
                %s154 = sphi %s140, %s140
                %s155 = sphi %s137, %s137
              $region39: #{rebnconv_forward.3} parent=35 // loop_header_branch
                %152 = sbr.rel (%p150) target = $region43
              $region40: #{rebnconv_forward.3} parent=35 // loop_body
                %v156 = vld [vmem:[%s154] sm:$0xff]
                %157 = vst [vmem:[%s155] sm:$0xff] %v156
                %v158 = vld [vmem:[%s154 + $0x10] sm:$0xff]
                %159 = vst [vmem:[%s155 + $0x8] sm:$0xff] %v158
                %v160 = vld [vmem:[%s154 + $0x20] sm:$0xff]
                %161 = vst [vmem:[%s155 + $0x10] sm:$0xff] %v160
                %v162 = vld [vmem:[%s154 + $0x30] sm:$0xff]
                %163 = vst [vmem:[%s155 + $0x18] sm:$0xff] %v162
                %v164 = vld [vmem:[%s154 + $0x40] sm:$0xff]
                %165 = vst [vmem:[%s155 + $0x20] sm:$0xff] %v164
              $region41: #{rebnconv_forward.3} parent=35 // loop_footer
                %s153 = sadd.s32 1, %s149
              $region42: #{rebnconv_forward.3} parent=35 // loop_footer_branch
                %148 = sbr.rel target = $region38
              $region43: #{rebnconv_forward.3} parent=35 // loop_exit
                _
            $region36: #{rebnconv_forward.3} parent=27 // pred_fallthru
              _
          $region28: #{rebnconv_forward.3} parent=23 // pred_fallthru
            _
          %188 = vnop
        $region24: #{rebnconv_forward.3} parent=19 // pred_fallthru
          _
      $region20: #{rebnconv_forward.3} parent=5 // pred_fallthru
        _
      %p189 = scmp.le.s32.totalorder 1, %s10
      %p190 = scmp.lt.s32.totalorder %s10, 3
      %p191 = pnand %p189, %p190
      %p192 = pneg %p191
      // Predicated region
      $region59: #{rebnconv_forward.3} parent=5 // pred_check
        _
      $region60: #{rebnconv_forward.3} parent=5 // pred_check_branch
        %194 = sbr.rel (%p191) target = $region62
      $region61: #{rebnconv_forward.3} parent=5 // pred_region
        %s195 = ssub.s32 %s10, 1
        %s196 = sand.u32 %s23, 1
        %s197 = sand.u32 %s23, 1
        %s198 = smul.addr %s197, 40
        %s199 = scalar_lea.vmem [#allocation2], %s198
        // Predicated region
        $region63: #{rebnconv_forward.3} parent=61 // pred_check
          %p200 = pneg %p36
        $region64: #{rebnconv_forward.3} parent=61 // pred_check_branch
          %202 = sbr.rel (%p200) target = $region66
        $region65: #{rebnconv_forward.3} parent=61 // pred_region
          _
        $region66: #{rebnconv_forward.3} parent=61 // pred_fallthru
          _
        %s203 = sand.u32 %s23, 1
        %s204 = sand.u32 %s23, 1
        %s205 = smul.addr %s204, 40
        %s206 = scalar_lea.vmem [#allocation2], %s205
        %p207 = pneg %p36
        %p208 = pneg %p33
        %p209 = pneg %p57
        %p210 = pneg %p54
        %p211 = pneg %p83
        %p212 = pneg %p80
        %s213 = smul.u32 2, %s15
        %p214 = scmp.lt.s32.totalorder %s213, 3
        %s215 = scalar_select %p214, %s213, 3
        %s216 = smul.addr %s215, 4
        %s217 = scalar_lea.vmem %s2, %s216
        %p218 = pneg %p109
        %p219 = pneg %p106
        %p220 = scmp.lt.s32.totalorder %s15, 1
        %s221 = scalar_select %p220, %s15, 1
        %s222 = smul.addr %s221, 8
        %s223 = scalar_lea.vmem %s3, %s222
        %s224 = smul.u32 2, %s15
        %s225 = smul.u32 2, %s15
        %p226 = scmp.lt.s32.totalorder %s225, 3
        %s227 = scalar_select %p226, %s225, 3
        %s228 = smul.addr %s227, 4
        %s229 = scalar_lea.vmem %s2, %s228
        %s230 = smul.u32 2, %s15
        %p231 = scmp.lt.s32.totalorder %s15, 1
        %s232 = scalar_select %p231, %s15, 1
        %s233 = smul.addr %s232, 8
        %s234 = scalar_lea.vmem %s3, %s233
        %v236 = vld [vmem:[%s1] sm:$0xf]
        %v237 = vld [vmem:[%s199] sm:$0xff]
        %v238 = vld [vmem:[%s199 + $0x8] sm:$0xff]
        %v239 = vld [vmem:[%s199 + $0x10] sm:$0xff]
        %v240 = vld [vmem:[%s199 + $0x18] sm:$0xff]
        %v241 = vld [vmem:[%s199 + $0x20] sm:$0x33]
        %v247 = vunpack.c.l.b16 %v237
        %v248 = vunpack.c.h.b16 %v237
        %v249 = vunpack.c.l.b16 %v238
        %v250 = vunpack.c.h.b16 %v238
        %v251 = vunpack.c.l.b16 %v239
        %v252 = vunpack.c.h.b16 %v239
        %v253 = vunpack.c.l.b16 %v240
        %v254 = vunpack.c.h.b16 %v240
        %v255 = vunpack.c.l.b16 %v241
        %v256 = vunpack.c.h.b16 %v241
        %v257 = vpack.c.b16 %v249, %v247
        %v258 = vpack.c.b16 %v250, %v248
        %v259 = vpack.c.b16 %v253, %v251
        %v260 = vpack.c.b16 %v254, %v252
        %v261 = vpack.c.b16 %v255, %v255
        %v262 = vpack.c.b16 %v256, %v256
        %vm267 = vcmask 293888
        %v269 = vsel %vm267, %v236, 0
        %vm271 = vcmask 1041408
        %v273 = vsel %vm271, %v261, 0
        %v276 = vsel %vm271, %v262, 0
        %278 = vmatprep.subr.bf16.mxu0 %v258
        %279 = vmatpush1.bf16.msra.mxu0 %v257
        %280 = vmatprep.subr.bf16.mxu0 %v260
        %281 = vmatpush1.bf16.msra.mxu0 %v259
        %282 = vmatprep.subr.bf16.mxu0 %v276
        %283 = vmatpush1.bf16.msra.mxu0 %v273
        %284 = vmatprep.subr.bf16.mxu0 0
        %285 = vmatpush1.bf16.msra.mxu0 0
        %286 = vmatprep.subr.bf16.mxu0 0
        %287 = vmatpush1.bf16.msra.mxu0 0
        %288 = vmatprep.subr.bf16.mxu0 0
        %289 = vmatpush1.bf16.msra.mxu0 0
        %290 = vmatprep.subr.bf16.mxu0 0
        %291 = vmatpush1.bf16.msra.mxu0 0
        %292 = vmatprep.subr.bf16.mxu0 0
        %293 = vmatpush1.bf16.msra.mxu0 0
        %294 = vmatprep.subr.bf16.mxu0 0
        %295 = vmatpush1.bf16.msra.mxu0 0
        %296 = vmatprep.subr.bf16.mxu0 0
        %297 = vmatpush1.bf16.msra.mxu0 0
        %298 = vmatprep.subr.bf16.mxu0 0
        %299 = vmatpush1.bf16.msra.mxu0 0
        %300 = vmatprep.subr.bf16.mxu0 0
        %301 = vmatpush1.bf16.msra.mxu0 0
        %302 = vmatprep.subr.bf16.mxu0 0
        %303 = vmatpush1.bf16.msra.mxu0 0
        %304 = vmatprep.subr.bf16.mxu0 0
        %305 = vmatpush1.bf16.msra.mxu0 0
        %306 = vmatprep.subr.bf16.mxu0 0
        %307 = vmatpush1.bf16.msra.mxu0 0
        %308 = vmatprep.subr.bf16.mxu0 0
        %309 = vmatpush1.bf16.msra.mxu0 0
        %310 = vmatprep.mubr.bf16.mxu0 0
        %311 = vmatmul.mubr.bf16.gmra.mrb[0].mxu0 %v269
        %v312 = vpop.f32.mrb[0].mxu0
        %v313 = vadd.f32 0.0, %v312
        %v314 = vpop.f32.mrb[0].mxu0
        %v315 = vadd.f32 0.0, %v314
        %v316 = vpop.f32.mrb[0].mxu0
        %v317 = vpop.f32.mrb[0].mxu0
        %318 = vdwg.mxu0
        %v319 = vpack.c.bf16 %v313, %v313
        %v320 = vpack.c.bf16 %v315, %v315
        %v323 = vunpack.c.l.b16 %v319
        %v324 = vunpack.c.l.b16 %v320
        %v325 = vpack.c.b16 %v324, %v323
        %327 = vst [vmem:[%s229] sm:$0xff] %v325
        %v328 = vadd.f32 %v313, %v315
        %329 = vadd.xlane.f32.xlu0 %v328
        %v330 = vpop.xlane.xlu0 %329
        %s331 = smul.u32 %s15, 256
        %s332 = ssub.s32 512, %s331
        %p333 = scmp.lt.s32.totalorder %s332, 256
        %s334 = scalar_select %p333, %s332, 256
        %p335 = scmp.gt.s32.totalorder %s334, 1
        %s336 = scalar_select %p335, %s334, 1
        %s337 = scvt.s32.f32 %s336
        %v338 = vstv %s337
        %v339 = vrcp.pop %v338
        %v340 = vmul.f32 %v330, %v339
        %v341 = vlaneseq
        %v342 = vand.u32 %v341, 127
        %v343 = vadd.s32 %v342, 128
        %v344 = vstv %s331
        %v345 = vadd.s32 %v344, %v342
        %v346 = vadd.s32 %v344, %v343
        %vm347 = vcmp.lt.s32.totalorder %v345, 512
        %vm348 = vcmp.lt.s32.totalorder %v346, 512
        %v349 = vsub.f32 %v313, %v340
        %v350 = vsub.f32 %v315, %v340
        %v351 = vsel %vm347, %v349, 0.0
        %v352 = vsel %vm348, %v350, 0.0
        %v353 = vmul.f32 %v351, %v351
        %v354 = vmul.f32 %v352, %v352
        %v355 = vadd.f32 %v353, %v354
        %356 = vadd.xlane.f32.xlu0 %v355
        %v357 = vpop.xlane.xlu0 %356
        %vm358 = vcmask 7168
        %v359 = vsel %vm358, %v330, %v357
        %vm360 = vcmask 15360
        %361 = vst.msk [vmem:[%s234] sm:$0xff] %vm360, %v359
        %s362 = smul.u32 2, %s15
        %p363 = scmp.lt.s32.totalorder %s362, 3
        %s364 = scalar_select %p363, %s362, 3
        %s365 = smul.addr %s364, 4
        %s366 = scalar_lea.vmem %s2, %s365
        %p367 = scmp.lt.s32.totalorder %s15, 1
        %s368 = scalar_select %p367, %s15, 1
        %s369 = smul.addr %s368, 8
        %s370 = scalar_lea.vmem %s3, %s369
        // Predicated region
        $region67: #{rebnconv_forward.3} parent=61 // pred_check
          %p371 = pneg %p80
        $region68: #{rebnconv_forward.3} parent=61 // pred_check_branch
          %373 = sbr.rel (%p371) target = $region70
        $region69: #{rebnconv_forward.3} parent=61 // pred_region
          %s374 = smul.u32 2, %s15
        $region70: #{rebnconv_forward.3} parent=61 // pred_fallthru
          _
        // Predicated region
        $region71: #{rebnconv_forward.3} parent=61 // pred_check
          %p375 = pneg %p106
        $region72: #{rebnconv_forward.3} parent=61 // pred_check_branch
          %377 = sbr.rel (%p375) target = $region74
        $region73: #{rebnconv_forward.3} parent=61 // pred_region
          _
        $region74: #{rebnconv_forward.3} parent=61 // pred_fallthru
          _
      $region62: #{rebnconv_forward.3} parent=5 // pred_fallthru
        _
      %p378 = scmp.le.s32.totalorder 2, %s10
      // Predicated region
      $region75: #{rebnconv_forward.3} parent=5 // pred_check
        %p379 = pneg %p378
      $region76: #{rebnconv_forward.3} parent=5 // pred_check_branch
        %381 = sbr.rel (%p379) target = $region78
      $region77: #{rebnconv_forward.3} parent=5 // pred_region
        %s382 = ssub.s32 %s10, 2
        // Predicated region
        $region79: #{rebnconv_forward.3} parent=77 // pred_check
          %p383 = pneg %p86
        $region80: #{rebnconv_forward.3} parent=77 // pred_check_branch
          %385 = sbr.rel (%p383) target = $region82
        $region81: #{rebnconv_forward.3} parent=77 // pred_region
          %s386 = smul.u32 2, %s16
          %p387 = scmp.lt.s32.totalorder %s386, 3
          %s388 = scalar_select %p387, %s386, 3
          %s389 = smul.addr %s388, 4
          %s390 = scalar_lea.vmem %s2, %s389
        $region82: #{rebnconv_forward.3} parent=77 // pred_fallthru
          _
        // Predicated region
        $region83: #{rebnconv_forward.3} parent=77 // pred_check
          %p391 = pneg %p112
        $region84: #{rebnconv_forward.3} parent=77 // pred_check_branch
          %393 = sbr.rel (%p391) target = $region86
        $region85: #{rebnconv_forward.3} parent=77 // pred_region
          %p394 = scmp.lt.s32.totalorder %s16, 1
          %s395 = scalar_select %p394, %s16, 1
          %s396 = smul.addr %s395, 8
          %s397 = scalar_lea.vmem %s3, %s396
        $region86: #{rebnconv_forward.3} parent=77 // pred_fallthru
          _
      $region78: #{rebnconv_forward.3} parent=5 // pred_fallthru
        _
    $region6: #{rebnconv_forward.3} parent=1 // loop_footer
      %s14 = sadd.s32 1, %s10
    $region7: #{rebnconv_forward.3} parent=1 // loop_footer_branch
      %9 = sbr.rel target = $region3
    $region8: #{rebnconv_forward.3} parent=1 // loop_exit
      _

// kernel: rebnconv_forward.4
$region0: #{rebnconv_forward.4}
  #allocation0 [shape = 'u32[]', space=smem, size = 0x4, offset = 0x4, fixed_abs, tag = 'smem constant byte address 0x4 - core index']
  #allocation1 [shape = 'u32[144,128]{1,0:T(1,128)}', space=vmem, size = 0x12000, scoped, tag = 'internal scratch']
  %s0 = inlined_call_operand.vmem [shape: bf16[72,512], index: 0, kind: input, shape index: {}]
  %s1 = inlined_call_operand.vmem [shape: bf16[8,72], index: 1, kind: input, shape index: {}]
  %s2 = inlined_call_operand.vmem [shape: bf16[8,512], index: 2, kind: output, shape index: {0}]
  %s3 = inlined_call_operand.vmem [shape: f32[2,8,2], index: 3, kind: output, shape index: {1}]
  %4 = xla_tuple %s2, %s3
  %s5 = sld [smem:[#allocation0]]
  $region87: #{rebnconv_forward.4} parent=0
    _
  %s7 = ssub.s32 1, %s5
  %s8 = scalar_select 0, %s7, %s5
  $region1: #{rebnconv_forward.4} parent=0
    #allocation2 [shape = 'u8[73728]{0}', space=vmem, size = 0x12000, scoped, tag = 'input window, operand 0']
    loop: start=0, step=1, limit=4
    $region2: #{rebnconv_forward.4} parent=1 // loop_pre_header
      _
    $region3: #{rebnconv_forward.4} parent=1 // loop_header
      %s10 = sphi 0, %s14
      %p11 = scmp.ge.s32.totalorder %s10, 4
      %s20 = sphi 0, %s22
      %s23 = sphi 0, %s20
      %s24 = sphi 0, %s23
      %s40 = sphi 0, %s24
      %s44 = sphi 0, %s44
      %s46 = sphi 0, %s44
      %s47 = sphi 0, %s46
      %s61 = sphi 0, %s47
      %s67 = sphi 0, %s69
      %s70 = sphi 0, %s67
      %s71 = sphi 0, %s70
      %s87 = sphi 0, %s71
      %s93 = sphi 0, %s95
      %s96 = sphi 0, %s93
      %s97 = sphi 0, %s96
      %s113 = sphi 0, %s97
    $region4: #{rebnconv_forward.4} parent=1 // loop_header_branch
      %13 = sbr.rel (%p11) target = $region8
    $region5: #{rebnconv_forward.4} parent=1 // loop_body
      %s15 = ssub.s32 %s10, 1
      %s16 = ssub.s32 %s10, 2
      %s17 = sadd.s32 %s10, 1
      %s18 = ssub.s32 %s10, %s17
      %p19 = scmp.eq.s32.totalorder %s18, 0
      %s21 = sadd.s32 %s20, 1
      %s22 = scalar_select %p19, %s20, %s21
      %p25 = pneg %p19
      %p26 = scmp.eq.s32.totalorder %s10, 1
      %p27 = por %p25, %p26
      %p28 = scmp.ne.s32.totalorder %s20, %s23
      %p29 = scmp.eq.s32.totalorder %s10, 0
      %p30 = por %p28, %p29
      %p31 = scmp.ne.s32.totalorder %s20, %s23
      %p32 = scmp.eq.s32.totalorder %s15, 1
      %p33 = por %p31, %p32
      %p34 = scmp.ne.s32.totalorder %s23, %s24
      %p35 = scmp.eq.s32.totalorder %s15, 0
      %p36 = por %p34, %p35
      %p37 = scmp.ne.s32.totalorder %s23, %s24
      %p38 = scmp.eq.s32.totalorder %s16, 1
      %p39 = por %p37, %p38
      %p41 = scmp.ne.s32.totalorder %s24, %s40
      %p42 = scmp.eq.s32.totalorder %s16, 0
      %p43 = por %p41, %p42
      %s45 = sadd.s32 %s44, 1
      %p48 = scmp.eq.s32.totalorder %s10, 1
      %p49 = scmp.ne.s32.totalorder %s44, %s46
      %p50 = scmp.eq.s32.totalorder %s10, 0
      %p51 = por %p49, %p50
      %p52 = scmp.ne.s32.totalorder %s44, %s46
      %p53 = scmp.eq.s32.totalorder %s15, 1
      %p54 = por %p52, %p53
      %p55 = scmp.ne.s32.totalorder %s46, %s47
      %p56 = scmp.eq.s32.totalorder %s15, 0
      %p57 = por %p55, %p56
      %p58 = scmp.ne.s32.totalorder %s46, %s47
      %p59 = scmp.eq.s32.totalorder %s16, 1
      %p60 = por %p58, %p59
      %p62 = scmp.ne.s32.totalorder %s47, %s61
      %p63 = scmp.eq.s32.totalorder %s16, 0
      %p64 = por %p62, %p63
      %s65 = ssub.s32 %s10, %s17
      %p66 = scmp.eq.s32.totalorder %s65, 0
      %s68 = sadd.s32 %s67, 1
      %s69 = scalar_select %p66, %s67, %s68
      %p72 = pneg %p66
      %p73 = scmp.eq.s32.totalorder %s10, 1
      %p74 = por %p72, %p73
      %p75 = scmp.ne.s32.totalorder %s67, %s70
      %p76 = scmp.eq.s32.totalorder %s10, 0
      %p77 = por %p75, %p76
      %p78 = scmp.ne.s32.totalorder %s67, %s70
      %p79 = scmp.eq.s32.totalorder %s15, 1
      %p80 = por %p78, %p79
      %p81 = scmp.ne.s32.totalorder %s70, %s71
      %p82 = scmp.eq.s32.totalorder %s15, 0
      %p83 = por %p81, %p82
      %p84 = scmp.ne.s32.totalorder %s70, %s71
      %p85 = scmp.eq.s32.totalorder %s16, 1
      %p86 = por %p84, %p85
      %p88 = scmp.ne.s32.totalorder %s71, %s87
      %p89 = scmp.eq.s32.totalorder %s16, 0
      %p90 = por %p88, %p89
      %s91 = ssub.s32 %s10, %s17
      %p92 = scmp.eq.s32.totalorder %s91, 0
      %s94 = sadd.s32 %s93, 1
      %s95 = scalar_select %p92, %s93, %s94
      %p98 = pneg %p92
      %p99 = scmp.eq.s32.totalorder %s10, 1
      %p100 = por %p98, %p99
      %p101 = scmp.ne.s32.totalorder %s93, %s96
      %p102 = scmp.eq.s32.totalorder %s10, 0
      %p103 = por %p101, %p102
      %p104 = scmp.ne.s32.totalorder %s93, %s96
      %p105 = scmp.eq.s32.totalorder %s15, 1
      %p106 = por %p104, %p105
      %p107 = scmp.ne.s32.totalorder %s96, %s97
      %p108 = scmp.eq.s32.totalorder %s15, 0
      %p109 = por %p107, %p108
      %p110 = scmp.ne.s32.totalorder %s96, %s97
      %p111 = scmp.eq.s32.totalorder %s16, 1
      %p112 = por %p110, %p111
      %p114 = scmp.ne.s32.totalorder %s97, %s113
      %p115 = scmp.eq.s32.totalorder %s16, 0
      %p116 = por %p114, %p115
      %p117 = scmp.le.s32.totalorder 1, %s10
      %p118 = scmp.lt.s32.totalorder %s10, 3
      %p119 = pnand %p117, %p118
      %p120 = pneg %p119
      // Predicated region
      $region9: #{rebnconv_forward.4} parent=5 // pred_check
        _
      $region10: #{rebnconv_forward.4} parent=5 // pred_check_branch
        %122 = sbr.rel (%p119) target = $region12
      $region11: #{rebnconv_forward.4} parent=5 // pred_region
        %s123 = ssub.s32 %s10, 1
        // Predicated region
        $region13: #{rebnconv_forward.4} parent=11 // pred_check
          %p124 = pneg %p57
        $region14: #{rebnconv_forward.4} parent=11 // pred_check_branch
          %126 = sbr.rel (%p124) target = $region16
        $region15: #{rebnconv_forward.4} parent=11 // pred_region
          _
        $region16: #{rebnconv_forward.4} parent=11 // pred_fallthru
          _
      $region12: #{rebnconv_forward.4} parent=5 // pred_fallthru
        _
      %p127 = scmp.lt.s32.totalorder %s10, 2
      // Predicated region
      $region17: #{rebnconv_forward.4} parent=5 // pred_check
        %p128 = pneg %p127
      $region18: #{rebnconv_forward.4} parent=5 // pred_check_branch
        %130 = sbr.rel (%p128) target = $region20
      $region19: #{rebnconv_forward.4} parent=5 // pred_region
        // Predicated region
        $region21: #{rebnconv_forward.4} parent=19 // pred_check
          %p131 = pneg %p30
        $region22: #{rebnconv_forward.4} parent=19 // pred_check_branch
          %133 = sbr.rel (%p131) target = $region24
        $region23: #{rebnconv_forward.4} parent=19 // pred_region
          %s134 = sand.u32 %s20, 1
          %s135 = sand.u32 %s20, 1
          %s136 = smul.addr %s135, 72
          %s137 = scalar_lea.vmem [#allocation2], %s136
          %s138 = smul.u32 2, %s10
          %s139 = smul.addr %s138, 4
          %s140 = scalar_lea.vmem %s0, %s139
          // Predicated region
          $region25: #{rebnconv_forward.4} parent=23 // pred_check
            _
          $region26: #{rebnconv_forward.4} parent=23 // pred_check_branch
            %142 = sbr.rel (0) target = $region28
          $region27: #{rebnconv_forward.4} parent=23 // pred_region
            // Predicated region
            $region29: #{rebnconv_forward.4} parent=27 // pred_check
              _
            $region30: #{rebnconv_forward.4} parent=27 // pred_check_branch
              %144 = sbr.rel (0) target = $region32
            $region31: #{rebnconv_forward.4} parent=27 // pred_region
              // Predicated region
              $region44: #{rebnconv_forward.4} parent=31 // pred_check
                _
              $region45: #{rebnconv_forward.4} parent=31 // pred_check_branch
                %175 = sbr.rel (0) target = $region47
              $region46: #{rebnconv_forward.4} parent=31 // pred_region
                loop: start=0, step=1, limit=1
                $region48: #{rebnconv_forward.4} parent=46 // loop_pre_header
                  _
                $region49: #{rebnconv_forward.4} parent=46 // loop_header
                  %s177 = sphi 0, %s181
                  %p178 = scmp.ge.s32.totalorder %s177, 1
                  %s182 = sphi %s140, %s140
                  %s183 = sphi %s137, %s137
                $region50: #{rebnconv_forward.4} parent=46 // loop_header_branch
                  %180 = sbr.rel (%p178) target = $region54
                $region51: #{rebnconv_forward.4} parent=46 // loop_body
                  %v184 = vld [vmem:[%s182] sm:$0xff]
                  %185 = vst [vmem:[%s183] sm:$0xff] %v184
                  %v186 = vld [vmem:[%s182 + $0x10] sm:$0xff]
                  %187 = vst [vmem:[%s183 + $0x8] sm:$0xff] %v186
                  %v188 = vld [vmem:[%s182 + $0x20] sm:$0xff]
                  %189 = vst [vmem:[%s183 + $0x10] sm:$0xff] %v188
                  %v190 = vld [vmem:[%s182 + $0x30] sm:$0xff]
                  %191 = vst [vmem:[%s183 + $0x18] sm:$0xff] %v190
                  %v192 = vld [vmem:[%s182 + $0x40] sm:$0xff]
                  %193 = vst [vmem:[%s183 + $0x20] sm:$0xff] %v192
                  %v194 = vld [vmem:[%s182 + $0x50] sm:$0xff]
                  %195 = vst [vmem:[%s183 + $0x28] sm:$0xff] %v194
                  %v196 = vld [vmem:[%s182 + $0x60] sm:$0xff]
                  %197 = vst [vmem:[%s183 + $0x30] sm:$0xff] %v196
                  %v198 = vld [vmem:[%s182 + $0x70] sm:$0xff]
                  %199 = vst [vmem:[%s183 + $0x38] sm:$0xff] %v198
                  %v200 = vld [vmem:[%s182 + $0x80] sm:$0xff]
                  %201 = vst [vmem:[%s183 + $0x40] sm:$0xff] %v200
                $region52: #{rebnconv_forward.4} parent=46 // loop_footer
                  %s181 = sadd.s32 1, %s177
                $region53: #{rebnconv_forward.4} parent=46 // loop_footer_branch
                  %176 = sbr.rel target = $region49
                $region54: #{rebnconv_forward.4} parent=46 // loop_exit
                  _
              $region47: #{rebnconv_forward.4} parent=31 // pred_fallthru
                _
              // Predicated region
              $region55: #{rebnconv_forward.4} parent=31 // pred_check
                _
              $region56: #{rebnconv_forward.4} parent=31 // pred_check_branch
                %203 = sbr.rel target = $region58
              $region57: #{rebnconv_forward.4} parent=31 // pred_region
                _
              $region58: #{rebnconv_forward.4} parent=31 // pred_fallthru
                _
            $region32: #{rebnconv_forward.4} parent=27 // pred_fallthru
              _
            // Predicated region
            $region33: #{rebnconv_forward.4} parent=27 // pred_check
              _
            $region34: #{rebnconv_forward.4} parent=27 // pred_check_branch
              %146 = sbr.rel target = $region36
            $region35: #{rebnconv_forward.4} parent=27 // pred_region
              loop: start=0, step=1, limit=1
              $region37: #{rebnconv_forward.4} parent=35 // loop_pre_header
                _
              $region38: #{rebnconv_forward.4} parent=35 // loop_header
                %s149 = sphi 0, %s153
                %p150 = scmp.ge.s32.totalorder %s149, 1
                %s154 = sphi %s140, %s140
                %s155 = sphi %s137, %s137
              $region39: #{rebnconv_forward.4} parent=35 // loop_header_branch
                %152 = sbr.rel (%p150) target = $region43
              $region40: #{rebnconv_forward.4} parent=35 // loop_body
                %v156 = vld [vmem:[%s154] sm:$0xff]
                %157 = vst [vmem:[%s155] sm:$0xff] %v156
                %v158 = vld [vmem:[%s154 + $0x10] sm:$0xff]
                %159 = vst [vmem:[%s155 + $0x8] sm:$0xff] %v158
                %v160 = vld [vmem:[%s154 + $0x20] sm:$0xff]
                %161 = vst [vmem:[%s155 + $0x10] sm:$0xff] %v160
                %v162 = vld [vmem:[%s154 + $0x30] sm:$0xff]
                %163 = vst [vmem:[%s155 + $0x18] sm:$0xff] %v162
                %v164 = vld [vmem:[%s154 + $0x40] sm:$0xff]
                %165 = vst [vmem:[%s155 + $0x20] sm:$0xff] %v164
                %v166 = vld [vmem:[%s154 + $0x50] sm:$0xff]
                %167 = vst [vmem:[%s155 + $0x28] sm:$0xff] %v166
                %v168 = vld [vmem:[%s154 + $0x60] sm:$0xff]
                %169 = vst [vmem:[%s155 + $0x30] sm:$0xff] %v168
                %v170 = vld [vmem:[%s154 + $0x70] sm:$0xff]
                %171 = vst [vmem:[%s155 + $0x38] sm:$0xff] %v170
                %v172 = vld [vmem:[%s154 + $0x80] sm:$0xff]
                %173 = vst [vmem:[%s155 + $0x40] sm:$0xff] %v172
              $region41: #{rebnconv_forward.4} parent=35 // loop_footer
                %s153 = sadd.s32 1, %s149
              $region42: #{rebnconv_forward.4} parent=35 // loop_footer_branch
                %148 = sbr.rel target = $region38
              $region43: #{rebnconv_forward.4} parent=35 // loop_exit
                _
            $region36: #{rebnconv_forward.4} parent=27 // pred_fallthru
              _
          $region28: #{rebnconv_forward.4} parent=23 // pred_fallthru
            _
          %204 = vnop
        $region24: #{rebnconv_forward.4} parent=19 // pred_fallthru
          _
      $region20: #{rebnconv_forward.4} parent=5 // pred_fallthru
        _
      %p205 = scmp.le.s32.totalorder 1, %s10
      %p206 = scmp.lt.s32.totalorder %s10, 3
      %p207 = pnand %p205, %p206
      %p208 = pneg %p207
      // Predicated region
      $region59: #{rebnconv_forward.4} parent=5 // pred_check
        _
      $region60: #{rebnconv_forward.4} parent=5 // pred_check_branch
        %210 = sbr.rel (%p207) target = $region62
      $region61: #{rebnconv_forward.4} parent=5 // pred_region
        %s211 = ssub.s32 %s10, 1
        %s212 = sand.u32 %s23, 1
        %s213 = sand.u32 %s23, 1
        %s214 = smul.addr %s213, 72
        %s215 = scalar_lea.vmem [#allocation2], %s214
        // Predicated region
        $region63: #{rebnconv_forward.4} parent=61 // pred_check
          %p216 = pneg %p36
        $region64: #{rebnconv_forward.4} parent=61 // pred_check_branch
          %218 = sbr.rel (%p216) target = $region66
        $region65: #{rebnconv_forward.4} parent=61 // pred_region
          _
        $region66: #{rebnconv_forward.4} parent=61 // pred_fallthru
          _
        %s219 = sand.u32 %s23, 1
        %s220 = sand.u32 %s23, 1
        %s221 = smul.addr %s220, 72
        %s222 = scalar_lea.vmem [#allocation2], %s221
        %p223 = pneg %p36
        %p224 = pneg %p33
        %p225 = pneg %p57
        %p226 = pneg %p54
        %p227 = pneg %p83
        %p228 = pneg %p80
        %s229 = smul.u32 2, %s15
        %p230 = scmp.lt.s32.totalorder %s229, 3
        %s231 = scalar_select %p230, %s229, 3
        %s232 = smul.addr %s231, 4
        %s233 = scalar_lea.vmem %s2, %s232
        %p234 = pneg %p109
        %p235 = pneg %p106
        %p236 = scmp.lt.s32.totalorder %s15, 1
        %s237 = scalar_select %p236, %s15, 1
        %s238 = smul.addr %s237, 8
        %s239 = scalar_lea.vmem %s3, %s238
        %s240 = smul.u32 2, %s15
        %s241 = smul.u32 2, %s15
        %p242 = scmp.lt.s32.totalorder %s241, 3
        %s243 = scalar_select %p242, %s241, 3
        %s244 = smul.addr %s243, 4
        %s245 = scalar_lea.vmem %s2, %s244
        %s246 = smul.u32 2, %s15
        %p247 = scmp.lt.s32.totalorder %s15, 1
        %s248 = scalar_select %p247, %s15, 1
        %s249 = smul.addr %s248, 8
        %s250 = scalar_lea.vmem %s3, %s249
        %v252 = vld [vmem:[%s1] sm:$0xf]
        %v253 = vld [vmem:[%s215] sm:$0xff]
        %v254 = vld [vmem:[%s215 + $0x8] sm:$0xff]
        %v255 = vld [vmem:[%s215 + $0x10] sm:$0xff]
        %v256 = vld [vmem:[%s215 + $0x18] sm:$0xff]
        %v257 = vld [vmem:[%s215 + $0x20] sm:$0xff]
        %v258 = vld [vmem:[%s215 + $0x28] sm:$0xff]
        %v259 = vld [vmem:[%s215 + $0x30] sm:$0xff]
        %v260 = vld [vmem:[%s215 + $0x38] sm:$0xff]
        %v261 = vld [vmem:[%s215 + $0x40] sm:$0xff]
        %v271 = vunpack.c.l.b16 %v253
        %v272 = vunpack.c.h.b16 %v253
        %v273 = vunpack.c.l.b16 %v254
        %v274 = vunpack.c.h.b16 %v254
        %v275 = vunpack.c.l.b16 %v255
        %v276 = vunpack.c.h.b16 %v255
        %v277 = vunpack.c.l.b16 %v256
        %v278 = vunpack.c.h.b16 %v256
        %v279 = vunpack.c.l.b16 %v257
        %v280 = vunpack.c.h.b16 %v257
        %v281 = vunpack.c.l.b16 %v258
        %v282 = vunpack.c.h.b16 %v258
        %v283 = vunpack.c.l.b16 %v259
        %v284 = vunpack.c.h.b16 %v259
        %v285 = vunpack.c.l.b16 %v260
        %v286 = vunpack.c.h.b16 %v260
        %v287 = vunpack.c.l.b16 %v261
        %v288 = vunpack.c.h.b16 %v261
        %v289 = vpack.c.b16 %v273, %v271
        %v290 = vpack.c.b16 %v274, %v272
        %v291 = vpack.c.b16 %v277, %v275
        %v292 = vpack.c.b16 %v278, %v276
        %v293 = vpack.c.b16 %v281, %v279
        %v294 = vpack.c.b16 %v282, %v280
        %v295 = vpack.c.b16 %v285, %v283
        %v296 = vpack.c.b16 %v286, %v284
        %v297 = vpack.c.b16 %v287, %v287
        %v298 = vpack.c.b16 %v288, %v288
        %vm307 = vcmask 588800
        %v309 = vsel %vm307, %v252, 0
        %vm311 = vcmask 1043456
        %v313 = vsel %vm311, %v297, 0
        %v316 = vsel %vm311, %v298, 0
        %318 = vmatprep.subr.bf16.mxu0 %v290
        %319 = vmatpush1.bf16.msra.mxu0 %v289
        %320 = vmatprep.subr.bf16.mxu0 %v292
        %321 = vmatpush1.bf16.msra.mxu0 %v291
        %322 = vmatprep.subr.bf16.mxu0 %v294
        %323 = vmatpush1.bf16.msra.mxu0 %v293
        %324 = vmatprep.subr.bf16.mxu0 %v296
        %325 = vmatpush1.bf16.msra.mxu0 %v295
        %326 = vmatprep.subr.bf16.mxu0 %v316
        %327 = vmatpush1.bf16.msra.mxu0 %v313
        %328 = vmatprep.subr.bf16.mxu0 0
        %329 = vmatpush1.bf16.msra.mxu0 0
        %330 = vmatprep.subr.bf16.mxu0 0
        %331 = vmatpush1.bf16.msra.mxu0 0
        %332 = vmatprep.subr.bf16.mxu0 0
        %333 = vmatpush1.bf16.msra.mxu0 0
        %334 = vmatprep.subr.bf16.mxu0 0
        %335 = vmatpush1.bf16.msra.mxu0 0
        %336 = vmatprep.subr.bf16.mxu0 0
        %337 = vmatpush1.bf16.msra.mxu0 0
        %338 = vmatprep.subr.bf16.mxu0 0
        %339 = vmatpush1.bf16.msra.mxu0 0
        %340 = vmatprep.subr.bf16.mxu0 0
        %341 = vmatpush1.bf16.msra.mxu0 0
        %342 = vmatprep.subr.bf16.mxu0 0
        %343 = vmatpush1.bf16.msra.mxu0 0
        %344 = vmatprep.subr.bf16.mxu0 0
        %345 = vmatpush1.bf16.msra.mxu0 0
        %346 = vmatprep.subr.bf16.mxu0 0
        %347 = vmatpush1.bf16.msra.mxu0 0
        %348 = vmatprep.subr.bf16.mxu0 0
        %349 = vmatpush1.bf16.msra.mxu0 0
        %350 = vmatprep.mubr.bf16.mxu0 0
        %351 = vmatmul.mubr.bf16.gmra.mrb[0].mxu0 %v309
        %v352 = vpop.f32.mrb[0].mxu0
        %v353 = vadd.f32 0.0, %v352
        %v354 = vpop.f32.mrb[0].mxu0
        %v355 = vadd.f32 0.0, %v354
        %v356 = vpop.f32.mrb[0].mxu0
        %v357 = vpop.f32.mrb[0].mxu0
        %358 = vdwg.mxu0
        %v359 = vpack.c.bf16 %v353, %v353
        %v360 = vpack.c.bf16 %v355, %v355
        %v363 = vunpack.c.l.b16 %v359
        %v364 = vunpack.c.l.b16 %v360
        %v365 = vpack.c.b16 %v364, %v363
        %367 = vst [vmem:[%s245] sm:$0xff] %v365
        %v368 = vadd.f32 %v353, %v355
        %369 = vadd.xlane.f32.xlu0 %v368
        %v370 = vpop.xlane.xlu0 %369
        %s371 = smul.u32 %s15, 256
        %s372 = ssub.s32 512, %s371
        %p373 = scmp.lt.s32.totalorder %s372, 256
        %s374 = scalar_select %p373, %s372, 256
        %p375 = scmp.gt.s32.totalorder %s374, 1
        %s376 = scalar_select %p375, %s374, 1
        %s377 = scvt.s32.f32 %s376
        %v378 = vstv %s377
        %v379 = vrcp.pop %v378
        %v380 = vmul.f32 %v370, %v379
        %v381 = vlaneseq
        %v382 = vand.u32 %v381, 127
        %v383 = vadd.s32 %v382, 128
        %v384 = vstv %s371
        %v385 = vadd.s32 %v384, %v382
        %v386 = vadd.s32 %v384, %v383
        %vm387 = vcmp.lt.s32.totalorder %v385, 512
        %vm388 = vcmp.lt.s32.totalorder %v386, 512
        %v389 = vsub.f32 %v353, %v380
        %v390 = vsub.f32 %v355, %v380
        %v391 = vsel %vm387, %v389, 0.0
        %v392 = vsel %vm388, %v390, 0.0
        %v393 = vmul.f32 %v391, %v391
        %v394 = vmul.f32 %v392, %v392
        %v395 = vadd.f32 %v393, %v394
        %396 = vadd.xlane.f32.xlu0 %v395
        %v397 = vpop.xlane.xlu0 %396
        %vm398 = vcmask 7168
        %v399 = vsel %vm398, %v370, %v397
        %vm400 = vcmask 15360
        %401 = vst.msk [vmem:[%s250] sm:$0xff] %vm400, %v399
        %s402 = smul.u32 2, %s15
        %p403 = scmp.lt.s32.totalorder %s402, 3
        %s404 = scalar_select %p403, %s402, 3
        %s405 = smul.addr %s404, 4
        %s406 = scalar_lea.vmem %s2, %s405
        %p407 = scmp.lt.s32.totalorder %s15, 1
        %s408 = scalar_select %p407, %s15, 1
        %s409 = smul.addr %s408, 8
        %s410 = scalar_lea.vmem %s3, %s409
        // Predicated region
        $region67: #{rebnconv_forward.4} parent=61 // pred_check
          %p411 = pneg %p80
        $region68: #{rebnconv_forward.4} parent=61 // pred_check_branch
          %413 = sbr.rel (%p411) target = $region70
        $region69: #{rebnconv_forward.4} parent=61 // pred_region
          %s414 = smul.u32 2, %s15
        $region70: #{rebnconv_forward.4} parent=61 // pred_fallthru
          _
        // Predicated region
        $region71: #{rebnconv_forward.4} parent=61 // pred_check
          %p415 = pneg %p106
        $region72: #{rebnconv_forward.4} parent=61 // pred_check_branch
          %417 = sbr.rel (%p415) target = $region74
        $region73: #{rebnconv_forward.4} parent=61 // pred_region
          _
        $region74: #{rebnconv_forward.4} parent=61 // pred_fallthru
          _
      $region62: #{rebnconv_forward.4} parent=5 // pred_fallthru
        _
      %p418 = scmp.le.s32.totalorder 2, %s10
      // Predicated region
      $region75: #{rebnconv_forward.4} parent=5 // pred_check
        %p419 = pneg %p418
      $region76: #{rebnconv_forward.4} parent=5 // pred_check_branch
        %421 = sbr.rel (%p419) target = $region78
      $region77: #{rebnconv_forward.4} parent=5 // pred_region
        %s422 = ssub.s32 %s10, 2
        // Predicated region
        $region79: #{rebnconv_forward.4} parent=77 // pred_check
          %p423 = pneg %p86
        $region80: #{rebnconv_forward.4} parent=77 // pred_check_branch
          %425 = sbr.rel (%p423) target = $region82
        $region81: #{rebnconv_forward.4} parent=77 // pred_region
          %s426 = smul.u32 2, %s16
          %p427 = scmp.lt.s32.totalorder %s426, 3
          %s428 = scalar_select %p427, %s426, 3
          %s429 = smul.addr %s428, 4
          %s430 = scalar_lea.vmem %s2, %s429
        $region82: #{rebnconv_forward.4} parent=77 // pred_fallthru
          _
        // Predicated region
        $region83: #{rebnconv_forward.4} parent=77 // pred_check
          %p431 = pneg %p112
        $region84: #{rebnconv_forward.4} parent=77 // pred_check_branch
          %433 = sbr.rel (%p431) target = $region86
        $region85: #{rebnconv_forward.4} parent=77 // pred_region
          %p434 = scmp.lt.s32.totalorder %s16, 1
          %s435 = scalar_select %p434, %s16, 1
          %s436 = smul.addr %s435, 8
          %s437 = scalar_lea.vmem %s3, %s436
        $region86: #{rebnconv_forward.4} parent=77 // pred_fallthru
          _
      $region78: #{rebnconv_forward.4} parent=5 // pred_fallthru
        _
    $region6: #{rebnconv_forward.4} parent=1 // loop_footer
      %s14 = sadd.s32 1, %s10
    $region7: #{rebnconv_forward.4} parent=1 // loop_footer_branch
      %9 = sbr.rel target = $region3
    $region8: #{rebnconv_forward.4} parent=1 // loop_exit
      _

// kernel: rebnconv_forward.5
$region0: #{rebnconv_forward.5}
  #allocation0 [shape = 'u32[]', space=smem, size = 0x4, offset = 0x4, fixed_abs, tag = 'smem constant byte address 0x4 - core index']
  #allocation1 [shape = 'u32[144,128]{1,0:T(1,128)}', space=vmem, size = 0x12000, scoped, tag = 'internal scratch']
  %s0 = inlined_call_operand.vmem [shape: bf16[8,512], index: 0, kind: input, shape index: {}]
  %s1 = inlined_call_operand.vmem [shape: f32[8,1], index: 1, kind: input, shape index: {}]
  %s2 = inlined_call_operand.vmem [shape: f32[8,1], index: 2, kind: input, shape index: {}]
  %s3 = inlined_call_operand.vmem [shape: f32[8,512], index: 3, kind: output, shape index: {}]
  %s4 = sld [smem:[#allocation0]]
  $region45: #{rebnconv_forward.5} parent=0
    _
  %s6 = ssub.s32 1, %s4
  %s7 = scalar_select 0, %s6, %s4
  loop: start=0, step=1, limit=4
  $region2: #{rebnconv_forward.5} parent=0 // loop_pre_header
    _
  $region3: #{rebnconv_forward.5} parent=0 // loop_header
    %s9 = sphi 0, %s13
    %p10 = scmp.ge.s32.totalorder %s9, 4
    %s19 = sphi 0, %s21
    %s22 = sphi 0, %s19
    %s23 = sphi 0, %s22
    %s39 = sphi 0, %s23
    %s43 = sphi 0, %s43
    %s45 = sphi 0, %s43
    %s46 = sphi 0, %s45
    %s60 = sphi 0, %s46
    %s64 = sphi 0, %s64
    %s66 = sphi 0, %s64
    %s67 = sphi 0, %s66
    %s81 = sphi 0, %s67
    %s87 = sphi 0, %s89
    %s90 = sphi 0, %s87
    %s91 = sphi 0, %s90
    %s107 = sphi 0, %s91
  $region4: #{rebnconv_forward.5} parent=0 // loop_header_branch
    %12 = sbr.rel (%p10) target = $region8
  $region5: #{rebnconv_forward.5} parent=0 // loop_body
    %s14 = ssub.s32 %s9, 1
    %s15 = ssub.s32 %s9, 2
    %s16 = sadd.s32 %s9, 1
    %s17 = ssub.s32 %s9, %s16
    %p18 = scmp.eq.s32.totalorder %s17, 0
    %s20 = sadd.s32 %s19, 1
    %s21 = scalar_select %p18, %s19, %s20
    %p24 = pneg %p18
    %p25 = scmp.eq.s32.totalorder %s9, 1
    %p26 = por %p24, %p25
    %p27 = scmp.ne.s32.totalorder %s19, %s22
    %p28 = scmp.eq.s32.totalorder %s9, 0
    %p29 = por %p27, %p28
    %p30 = scmp.ne.s32.totalorder %s19, %s22
    %p31 = scmp.eq.s32.totalorder %s14, 1
    %p32 = por %p30, %p31
    %p33 = scmp.ne.s32.totalorder %s22, %s23
    %p34 = scmp.eq.s32.totalorder %s14, 0
    %p35 = por %p33, %p34
    %p36 = scmp.ne.s32.totalorder %s22, %s23
    %p37 = scmp.eq.s32.totalorder %s15, 1
    %p38 = por %p36, %p37
    %p40 = scmp.ne.s32.totalorder %s23, %s39
    %p41 = scmp.eq.s32.totalorder %s15, 0
    %p42 = por %p40, %p41
    %s44 = sadd.s32 %s43, 1
    %p47 = scmp.eq.s32.totalorder %s9, 1
    %p48 = scmp.ne.s32.totalorder %s43, %s45
    %p49 = scmp.eq.s32.totalorder %s9, 0
    %p50 = por %p48, %p49
    %p51 = scmp.ne.s32.totalorder %s43, %s45
    %p52 = scmp.eq.s32.totalorder %s14, 1
    %p53 = por %p51, %p52
    %p54 = scmp.ne.s32.totalorder %s45, %s46
    %p55 = scmp.eq.s32.totalorder %s14, 0
    %p56 = por %p54, %p55
    %p57 = scmp.ne.s32.totalorder %s45, %s46
    %p58 = scmp.eq.s32.totalorder %s15, 1
    %p59 = por %p57, %p58
    %p61 = scmp.ne.s32.totalorder %s46, %s60
    %p62 = scmp.eq.s32.totalorder %s15, 0
    %p63 = por %p61, %p62
    %s65 = sadd.s32 %s64, 1
    %p68 = scmp.eq.s32.totalorder %s9, 1
    %p69 = scmp.ne.s32.totalorder %s64, %s66
    %p70 = scmp.eq.s32.totalorder %s9, 0
    %p71 = por %p69, %p70
    %p72 = scmp.ne.s32.totalorder %s64, %s66
    %p73 = scmp.eq.s32.totalorder %s14, 1
    %p74 = por %p72, %p73
    %p75 = scmp.ne.s32.totalorder %s66, %s67
    %p76 = scmp.eq.s32.totalorder %s14, 0
    %p77 = por %p75, %p76
    %p78 = scmp.ne.s32.totalorder %s66, %s67
    %p79 = scmp.eq.s32.totalorder %s15, 1
    %p80 = por %p78, %p79
    %p82 = scmp.ne.s32.totalorder %s67, %s81
    %p83 = scmp.eq.s32.totalorder %s15, 0
    %p84 = por %p82, %p83
    %s85 = ssub.s32 %s9, %s16
    %p86 = scmp.eq.s32.totalorder %s85, 0
    %s88 = sadd.s32 %s87, 1
    %s89 = scalar_select %p86, %s87, %s88
    %p92 = pneg %p86
    %p93 = scmp.eq.s32.totalorder %s9, 1
    %p94 = por %p92, %p93
    %p95 = scmp.ne.s32.totalorder %s87, %s90
    %p96 = scmp.eq.s32.totalorder %s9, 0
    %p97 = por %p95, %p96
    %p98 = scmp.ne.s32.totalorder %s87, %s90
    %p99 = scmp.eq.s32.totalorder %s14, 1
    %p100 = por %p98, %p99
    %p101 = scmp.ne.s32.totalorder %s90, %s91
    %p102 = scmp.eq.s32.totalorder %s14, 0
    %p103 = por %p101, %p102
    %p104 = scmp.ne.s32.totalorder %s90, %s91
    %p105 = scmp.eq.s32.totalorder %s15, 1
    %p106 = por %p104, %p105
    %p108 = scmp.ne.s32.totalorder %s91, %s107
    %p109 = scmp.eq.s32.totalorder %s15, 0
    %p110 = por %p108, %p109
    %p111 = scmp.le.s32.totalorder 1, %s9
    %p112 = scmp.lt.s32.totalorder %s9, 3
    %p113 = pnand %p111, %p112
    %p114 = pneg %p113
    // Predicated region
    $region9: #{rebnconv_forward.5} parent=5 // pred_check
      _
    $region10: #{rebnconv_forward.5} parent=5 // pred_check_branch
      %116 = sbr.rel (%p113) target = $region12
    $region11: #{rebnconv_forward.5} parent=5 // pred_region
      %s117 = ssub.s32 %s9, 1
      // Predicated region
      $region13: #{rebnconv_forward.5} parent=11 // pred_check
        %p118 = pneg %p56
      $region14: #{rebnconv_forward.5} parent=11 // pred_check_branch
        %120 = sbr.rel (%p118) target = $region16
      $region15: #{rebnconv_forward.5} parent=11 // pred_region
        _
      $region16: #{rebnconv_forward.5} parent=11 // pred_fallthru
        _
      // Predicated region
      $region17: #{rebnconv_forward.5} parent=11 // pred_check
        %p121 = pneg %p77
      $region18: #{rebnconv_forward.5} parent=11 // pred_check_branch
        %123 = sbr.rel (%p121) target = $region20
      $region19: #{rebnconv_forward.5} parent=11 // pred_region
        _
      $region20: #{rebnconv_forward.5} parent=11 // pred_fallthru
        _
    $region12: #{rebnconv_forward.5} parent=5 // pred_fallthru
      _
    %p124 = scmp.lt.s32.totalorder %s9, 2
    // Predicated region
    $region21: #{rebnconv_forward.5} parent=5 // pred_check
      %p125 = pneg %p124
    $region22: #{rebnconv_forward.5} parent=5 // pred_check_branch
      %127 = sbr.rel (%p125) target = $region24
    $region23: #{rebnconv_forward.5} parent=5 // pred_region
      // Predicated region
      $region25: #{rebnconv_forward.5} parent=23 // pred_check
        %p128 = pneg %p29
      $region26: #{rebnconv_forward.5} parent=23 // pred_check_branch
        %130 = sbr.rel (%p128) target = $region28
      $region27: #{rebnconv_forward.5} parent=23 // pred_region
        %s131 = smul.u32 2, %s9
        %p132 = scmp.lt.s32.totalorder %s131, 3
        %s133 = scalar_select %p132, %s131, 3
        %s134 = smul.addr %s133, 4
        %s135 = scalar_lea.vmem %s0, %s134
        %s136 = smul.u32 2, %s9
      $region28: #{rebnconv_forward.5} parent=23 // pred_fallthru
        _
    $region24: #{rebnconv_forward.5} parent=5 // pred_fallthru
      _
    %p137 = scmp.le.s32.totalorder 1, %s9
    %p138 = scmp.lt.s32.totalorder %s9, 3
    %p139 = pnand %p137, %p138
    %p140 = pneg %p139
    // Predicated region
    $region29: #{rebnconv_forward.5} parent=5 // pred_check
      _
    $region30: #{rebnconv_forward.5} parent=5 // pred_check_branch
      %142 = sbr.rel (%p139) target = $region32
    $region31: #{rebnconv_forward.5} parent=5 // pred_region
      %s143 = ssub.s32 %s9, 1
      %s144 = smul.u32 2, %s14
      %p145 = scmp.lt.s32.totalorder %s144, 3
      %s146 = scalar_select %p145, %s144, 3
      %s147 = smul.addr %s146, 4
      %s148 = scalar_lea.vmem %s0, %s147
      %p149 = pneg %p35
      %p150 = pneg %p32
      %p151 = pneg %p56
      %p152 = pneg %p53
      %p153 = pneg %p77
      %p154 = pneg %p74
      %p155 = pneg %p103
      %p156 = pneg %p100
      %s157 = smul.u32 2, %s14
      %p158 = scmp.lt.s32.totalorder %s157, 3
      %s159 = scalar_select %p158, %s157, 3
      %s160 = smul.addr %s159, 8
      %s161 = scalar_lea.vmem %s3, %s160
      %s162 = smul.u32 2, %s14
      %p163 = scmp.lt.s32.totalorder %s162, 3
      %s164 = scalar_select %p163, %s162, 3
      %s165 = smul.addr %s164, 4
      %s166 = scalar_lea.vmem %s0, %s165
      %s167 = smul.u32 2, %s14
      %s168 = smul.u32 2, %s14
      %p169 = scmp.lt.s32.totalorder %s168, 3
      %s170 = scalar_select %p169, %s168, 3
      %s171 = smul.addr %s170, 8
      %s172 = scalar_lea.vmem %s3, %s171
      %s173 = smul.u32 2, %s14
      %v174 = vld [vmem:[%s166] sm:$0xff]
      %v175 = vunpack.c.l.bf16 %v174
      %v176 = vunpack.c.h.bf16 %v174
      %v177 = vld [vmem:[%s1] sm:$0xff]
      %179 = vset.pattern.permute.xlu0 0
      %180 = vperm.xlu0 %179, %v177
      %v181 = vpop.permute.xlu0 %180
      %v183 = vmul.f32 %v175, %v181
      %v184 = vmul.f32 %v176, %v181
      %v185 = vld [vmem:[%s2] sm:$0xff]
      %187 = vset.pattern.permute.xlu0 0
      %188 = vperm.xlu0 %187, %v185
      %v189 = vpop.permute.xlu0 %188
      %v191 = vadd.f32 %v183, %v189
      %v192 = vadd.f32 %v184, %v189
      %v193 = vmax.f32 %v191, 0.0
      %v194 = vmax.f32 %v192, 0.0
      %195 = vst [vmem:[%s172] sm:$0xff] %v193
      %196 = vst [vmem:[%s172 + $0x8] sm:$0xff] %v194
      %s197 = smul.u32 2, %s14
      %p198 = scmp.lt.s32.totalorder %s197, 3
      %s199 = scalar_select %p198, %s197, 3
      %s200 = smul.addr %s199, 8
      %s201 = scalar_lea.vmem %s3, %s200
      // Predicated region
      $region33: #{rebnconv_forward.5} parent=31 // pred_check
        %p202 = pneg %p100
      $region34: #{rebnconv_forward.5} parent=31 // pred_check_branch
        %204 = sbr.rel (%p202) target = $region36
      $region35: #{rebnconv_forward.5} parent=31 // pred_region
        %s205 = smul.u32 2, %s14
      $region36: #{rebnconv_forward.5} parent=31 // pred_fallthru
        _
    $region32: #{rebnconv_forward.5} parent=5 // pred_fallthru
      _
    %p206 = scmp.le.s32.totalorder 2, %s9
    // Predicated region
    $region37: #{rebnconv_forward.5} parent=5 // pred_check
      %p207 = pneg %p206
    $region38: #{rebnconv_forward.5} parent=5 // pred_check_branch
      %209 = sbr.rel (%p207) target = $region40
    $region39: #{rebnconv_forward.5} parent=5 // pred_region
      %s210 = ssub.s32 %s9, 2
      // Predicated region
      $region41: #{rebnconv_forward.5} parent=39 // pred_check
        %p211 = pneg %p106
      $region42: #{rebnconv_forward.5} parent=39 // pred_check_branch
        %213 = sbr.rel (%p211) target = $region44
      $region43: #{rebnconv_forward.5} parent=39 // pred_region
        %s214 = smul.u32 2, %s15
        %p215 = scmp.lt.s32.totalorder %s214, 3
        %s216 = scalar_select %p215, %s214, 3
        %s217 = smul.addr %s216, 8
        %s218 = scalar_lea.vmem %s3, %s217
      $region44: #{rebnconv_forward.5} parent=39 // pred_fallthru
        _
    $region40: #{rebnconv_forward.5} parent=5 // pred_fallthru
      _
  $region6: #{rebnconv_forward.5} parent=0 // loop_footer
    %s13 = sadd.s32 1, %s9
  $region7: #{rebnconv_forward.5} parent=0 // loop_footer_branch
    %8 = sbr.rel target = $region3
  $region8: #{rebnconv_forward.5} parent=0 // loop_exit
    _

</llo_original>
